<compile_context>
chip_gen: v6e
topology: v6e:2x2x1
jax: 0.10.0
libtpu: 0.0.40
codegen_flags: <defaults>
</compile_context>

<pallas_src>
import functools

import jax
import jax.numpy as jnp
from jax.experimental import pallas as pl
from jax.experimental.pallas import tpu as pltpu

BATCH = 16
D_IN, D_H1, D_H2, D_OUT = 784, 300, 100, 10
# Lane-padded (multiple-of-128) output feature dims. K of layer 1 stays 784.
P_H1, P_H2, P_OUT = 384, 128, 128


def mlp_kernel(x_ref, w1_ref, b1_ref, w2_ref, b2_ref, w3_ref, b3_ref, o_ref):
    # One batch tile per grid step; weights/biases are resident (constant index_map).
    # Matmuls run on the MXU with bf16 inputs and f32 accumulation; bias-add / ReLU
    # run on the VPU in f32.
    h1 = jnp.dot(x_ref[...], w1_ref[...],
                 preferred_element_type=jnp.float32) + b1_ref[...]
    h1 = jnp.maximum(h1, 0.0)                              # (TB, 384) f32
    h2 = jnp.dot(h1.astype(jnp.bfloat16), w2_ref[...],
                 preferred_element_type=jnp.float32) + b2_ref[...]
    h2 = jnp.maximum(h2, 0.0)                              # (TB, 128) f32
    h3 = jnp.dot(h2.astype(jnp.bfloat16), w3_ref[...],
                 preferred_element_type=jnp.float32) + b3_ref[...]
    o_ref[...] = jnp.maximum(h3, 0.0).astype(o_ref.dtype)  # (TB, 128) lane-dense store


def _pad_last(a, target):
    return jnp.pad(a, [(0, 0)] * (a.ndim - 1) + [(0, target - a.shape[-1])])


def prepare_params(params):
    """One-time weight prep: pad output dims to 128 lanes, cast weights to bf16.

    Run once at init and reuse; this keeps the per-call forward free of the
    pad/cast XLA ops (which otherwise move 2-3x the kernel's own HBM bytes).
    """
    w1, b1, w2, b2, w3, b3 = params
    w1p = jnp.pad(w1, ((0, 0), (0, P_H1 - D_H1))).astype(jnp.bfloat16)          # (784, 384)
    w2p = jnp.pad(w2, ((0, P_H1 - D_H1), (0, P_H2 - D_H2))).astype(jnp.bfloat16)  # (384, 128)
    w3p = jnp.pad(w3, ((0, P_H2 - D_H2), (0, P_OUT - D_OUT))).astype(jnp.bfloat16)  # (128, 128)
    b1p = _pad_last(b1, P_H1).astype(jnp.float32)
    b2p = _pad_last(b2, P_H2).astype(jnp.float32)
    b3p = _pad_last(b3, P_OUT).astype(jnp.float32)
    return (w1p, b1p, w2p, b2p, w3p, b3p)


@jax.jit
def linear_mnist_forward(x_nchw, prepared_params):
    """Forward pass matching the PyTorch module: x.view(B, -1) -> 3x (Linear+ReLU)."""
    w1p, b1p, w2p, b2p, w3p, b3p = prepared_params
    B = x_nchw.shape[0]
    # out = x.view(B, -1); cast to bf16 once (no lane padding: K=784 block is
    # full-extent, layout rounds to 7 lane-vregs either way).
    x2d = x_nchw.reshape(B, -1).astype(jnp.bfloat16)       # (B, 784) bf16

    # Batch tile: whole batch if small, else 128-row tiles sharded across cores.
    TB = B if B <= 128 else 128
    assert B % TB == 0, "batch must be a multiple of the batch tile"
    grid = (B // TB,)

    flops = 2 * B * (D_IN * P_H1 + P_H1 * P_H2 + P_H2 * P_OUT)
    bytes_accessed = (
        2 * (D_IN * P_H1 + P_H1 * P_H2 + P_H2 * P_OUT)     # bf16 weights
        + 4 * (P_H1 + P_H2 + P_OUT)                        # f32 biases
        + 2 * B * D_IN                                     # bf16 input
        + 4 * B * P_OUT                                    # f32 output
    )

    out_padded = pl.pallas_call(
        mlp_kernel,
        out_shape=jax.ShapeDtypeStruct((B, P_OUT), jnp.float32),
        grid=grid,
        in_specs=[
            pl.BlockSpec((TB, D_IN), lambda i: (i, 0)),    # x tile: marches over batch
            pl.BlockSpec((D_IN, P_H1), lambda i: (0, 0)),  # W1 resident
            pl.BlockSpec((1, P_H1), lambda i: (0, 0)),     # b1 resident
            pl.BlockSpec((P_H1, P_H2), lambda i: (0, 0)),  # W2 resident
            pl.BlockSpec((1, P_H2), lambda i: (0, 0)),     # b2 resident
            pl.BlockSpec((P_H2, P_OUT), lambda i: (0, 0)), # W3 resident
            pl.BlockSpec((1, P_OUT), lambda i: (0, 0)),    # b3 resident
        ],
        out_specs=pl.BlockSpec((TB, P_OUT), lambda i: (i, 0)),
        compiler_params=pltpu.CompilerParams(
            dimension_semantics=("parallel",)),            # v7x: shard batch over 2 TCs
        cost_estimate=pl.CostEstimate(
            flops=flops, transcendentals=0, bytes_accessed=bytes_accessed),
    )(x2d, w1p, b1p, w2p, b2p, w3p, b3p)

    # Slice the lane padding back off.
    return out_padded[:, :D_OUT]


def init_params(key):
    # Deterministic init mimicking PyTorch's default nn.Linear init:
    # U(-1/sqrt(fan_in), 1/sqrt(fan_in)) for both weight and bias.
    def one_layer(k, fan_in, fan_out):
        kw, kb = jax.random.split(k)
        bound = 1.0 / jnp.sqrt(jnp.float32(fan_in))
        w = jax.random.uniform(kw, (fan_in, fan_out), jnp.float32, -bound, bound)
        b = jax.random.uniform(kb, (1, fan_out), jnp.float32, -bound, bound)
        return w, b

    k1, k2, k3 = jax.random.split(key, 3)
    w1, b1 = one_layer(k1, D_IN, D_H1)
    w2, b2 = one_layer(k2, D_H1, D_H2)
    w3, b3 = one_layer(k3, D_H2, D_OUT)
    return (w1, b1, w2, b2, w3, b3)


if __name__ == "__main__":
    key = jax.random.PRNGKey(0)
    k_params, k_x = jax.random.split(key)
    params = init_params(k_params)
    prepared = prepare_params(params)          # one-time weight pad + bf16 cast
    prepared = jax.block_until_ready(prepared)

    # MNIST-shaped input: NCHW (16, 1, 28, 28)
    x = jax.random.normal(k_x, (BATCH, 1, 28, 28), dtype=jnp.float32)

    out = linear_mnist_forward(x, prepared)
    out = jax.block_until_ready(out)

    # Plain-JAX reference mirroring the kernel's numerics (bf16 inputs/weights to
    # each matmul, f32 accumulation and f32 bias/ReLU).
    w1, b1, w2, b2, w3, b3 = params
    f32 = lambda a: a.astype(jnp.bfloat16).astype(jnp.float32)
    x2d = f32(x.reshape(BATCH, -1))
    ref = jnp.maximum(x2d @ f32(w1) + b1, 0.0)
    ref = jnp.maximum(f32(ref) @ f32(w2) + b2, 0.0)
    ref = jnp.maximum(f32(ref) @ f32(w3) + b3, 0.0)

    assert out.shape == (BATCH, D_OUT)
    assert jnp.allclose(out, ref, atol=2e-2, rtol=2e-2), (
        float(jnp.max(jnp.abs(out - ref))))

    print("KERNEL_OK")
</pallas_src>

<mosaic_0001>
module attributes {stable_mosaic.version = 11 : i64} {
  func.func @mlp_kernel(%arg0: i32, %arg1: memref<16x784xbf16, #tpu.memory_space<vmem>>, %arg2: memref<784x384xbf16, #tpu.memory_space<vmem>>, %arg3: memref<1x384xf32, #tpu.memory_space<vmem>>, %arg4: memref<384x128xbf16, #tpu.memory_space<vmem>>, %arg5: memref<1x128xf32, #tpu.memory_space<vmem>>, %arg6: memref<128x128xbf16, #tpu.memory_space<vmem>>, %arg7: memref<1x128xf32, #tpu.memory_space<vmem>>, %arg8: memref<16x128xf32, #tpu.memory_space<vmem>>) attributes {dimension_semantics = [#tpu.dimension_semantics<parallel>], iteration_bounds = array<i64: 1>, scalar_prefetch = 0 : i64, scratch_operands = 0 : i64, tpu.core_type = #tpu.core_type<tc>, window_params = [{transform_indices = @transform_0, window_bounds = array<i64: 16, 784>}, {pipeline_mode = #tpu.pipeline_mode<synchronous>, transform_indices = @transform_1, window_bounds = array<i64: 784, 384>}, {pipeline_mode = #tpu.pipeline_mode<synchronous>, transform_indices = @transform_2, window_bounds = array<i64: 1, 384>}, {pipeline_mode = #tpu.pipeline_mode<synchronous>, transform_indices = @transform_3, window_bounds = array<i64: 384, 128>}, {pipeline_mode = #tpu.pipeline_mode<synchronous>, transform_indices = @transform_4, window_bounds = array<i64: 1, 128>}, {pipeline_mode = #tpu.pipeline_mode<synchronous>, transform_indices = @transform_5, window_bounds = array<i64: 128, 128>}, {pipeline_mode = #tpu.pipeline_mode<synchronous>, transform_indices = @transform_6, window_bounds = array<i64: 1, 128>}, {transform_indices = @transform_7, window_bounds = array<i64: 16, 128>}]} {
    %c0 = arith.constant 0 : index
    %c0_0 = arith.constant 0 : index
    %0 = vector.load %arg1[%c0, %c0_0] : memref<16x784xbf16, #tpu.memory_space<vmem>>, vector<16x784xbf16>
    %c0_1 = arith.constant 0 : index
    %c0_2 = arith.constant 0 : index
    %1 = vector.load %arg2[%c0_1, %c0_2] : memref<784x384xbf16, #tpu.memory_space<vmem>>, vector<784x384xbf16>
    %cst = arith.constant dense<0.000000e+00> : vector<16x384xf32>
    %2 = tpu.matmul %0, %1, %cst {dimension_numbers = #tpu.dot_dimension_numbers<[1], [0], [0], [1], [0, 0, 1, 1], [], []>} : vector<16x784xbf16>, vector<784x384xbf16>, vector<16x384xf32> -> vector<16x384xf32>
    %c0_3 = arith.constant 0 : index
    %c0_4 = arith.constant 0 : index
    %3 = vector.load %arg3[%c0_3, %c0_4] : memref<1x384xf32, #tpu.memory_space<vmem>>, vector<1x384xf32>
    %4 = vector.broadcast %3 : vector<1x384xf32> to vector<16x384xf32>
    %5 = arith.addf %2, %4 : vector<16x384xf32>
    %cst_5 = arith.constant 0.000000e+00 : f32
    %6 = vector.broadcast %cst_5 : f32 to vector<16x384xf32>
    %7 = arith.maximumf %5, %6 : vector<16x384xf32>
    %8 = arith.truncf %7 : vector<16x384xf32> to vector<16x384xbf16>
    %c0_6 = arith.constant 0 : index
    %c0_7 = arith.constant 0 : index
    %9 = vector.load %arg4[%c0_6, %c0_7] : memref<384x128xbf16, #tpu.memory_space<vmem>>, vector<384x128xbf16>
    %cst_8 = arith.constant dense<0.000000e+00> : vector<16x128xf32>
    %10 = tpu.matmul %8, %9, %cst_8 {dimension_numbers = #tpu.dot_dimension_numbers<[1], [0], [0], [1], [0, 0, 1, 1], [], []>} : vector<16x384xbf16>, vector<384x128xbf16>, vector<16x128xf32> -> vector<16x128xf32>
    %c0_9 = arith.constant 0 : index
    %c0_10 = arith.constant 0 : index
    %11 = vector.load %arg5[%c0_9, %c0_10] : memref<1x128xf32, #tpu.memory_space<vmem>>, vector<1x128xf32>
    %12 = vector.broadcast %11 : vector<1x128xf32> to vector<16x128xf32>
    %13 = arith.addf %10, %12 : vector<16x128xf32>
    %cst_11 = arith.constant 0.000000e+00 : f32
    %14 = vector.broadcast %cst_11 : f32 to vector<16x128xf32>
    %15 = arith.maximumf %13, %14 : vector<16x128xf32>
    %16 = arith.truncf %15 : vector<16x128xf32> to vector<16x128xbf16>
    %c0_12 = arith.constant 0 : index
    %c0_13 = arith.constant 0 : index
    %17 = vector.load %arg6[%c0_12, %c0_13] : memref<128x128xbf16, #tpu.memory_space<vmem>>, vector<128x128xbf16>
    %cst_14 = arith.constant dense<0.000000e+00> : vector<16x128xf32>
    %18 = tpu.matmul %16, %17, %cst_14 {dimension_numbers = #tpu.dot_dimension_numbers<[1], [0], [0], [1], [0, 0, 1, 1], [], []>} : vector<16x128xbf16>, vector<128x128xbf16>, vector<16x128xf32> -> vector<16x128xf32>
    %c0_15 = arith.constant 0 : index
    %c0_16 = arith.constant 0 : index
    %19 = vector.load %arg7[%c0_15, %c0_16] : memref<1x128xf32, #tpu.memory_space<vmem>>, vector<1x128xf32>
    %20 = vector.broadcast %19 : vector<1x128xf32> to vector<16x128xf32>
    %21 = arith.addf %18, %20 : vector<16x128xf32>
    %cst_17 = arith.constant 0.000000e+00 : f32
    %22 = vector.broadcast %cst_17 : f32 to vector<16x128xf32>
    %23 = arith.maximumf %21, %22 : vector<16x128xf32>
    %c0_18 = arith.constant 0 : index
    %c0_19 = arith.constant 0 : index
    %24 = vector.load %arg8[%c0_18, %c0_19] : memref<16x128xf32, #tpu.memory_space<vmem>>, vector<16x128xf32>
    tpu.vector_store %arg8[%c0_18, %c0_19], %23 {strides = array<i32>} : memref<16x128xf32, #tpu.memory_space<vmem>>, vector<16x128xf32>,
    return
  }
  func.func @transform_0(%arg0: i32) -> (i32, i32) {
    %c0_i32 = arith.constant 0 : i32
    %c0_i32_0 = arith.constant 0 : i32
    return %arg0, %c0_i32 : i32, i32
  }
  func.func @transform_1(%arg0: i32) -> (i32, i32) {
    %c0_i32 = arith.constant 0 : i32
    %c0_i32_0 = arith.constant 0 : i32
    %c0_i32_1 = arith.constant 0 : i32
    return %c0_i32, %c0_i32_0 : i32, i32
  }
  func.func @transform_2(%arg0: i32) -> (i32, i32) {
    %c0_i32 = arith.constant 0 : i32
    %c0_i32_0 = arith.constant 0 : i32
    %c0_i32_1 = arith.constant 0 : i32
    return %c0_i32, %c0_i32_0 : i32, i32
  }
  func.func @transform_3(%arg0: i32) -> (i32, i32) {
    %c0_i32 = arith.constant 0 : i32
    %c0_i32_0 = arith.constant 0 : i32
    %c0_i32_1 = arith.constant 0 : i32
    return %c0_i32, %c0_i32_0 : i32, i32
  }
  func.func @transform_4(%arg0: i32) -> (i32, i32) {
    %c0_i32 = arith.constant 0 : i32
    %c0_i32_0 = arith.constant 0 : i32
    %c0_i32_1 = arith.constant 0 : i32
    return %c0_i32, %c0_i32_0 : i32, i32
  }
  func.func @transform_5(%arg0: i32) -> (i32, i32) {
    %c0_i32 = arith.constant 0 : i32
    %c0_i32_0 = arith.constant 0 : i32
    %c0_i32_1 = arith.constant 0 : i32
    return %c0_i32, %c0_i32_0 : i32, i32
  }
  func.func @transform_6(%arg0: i32) -> (i32, i32) {
    %c0_i32 = arith.constant 0 : i32
    %c0_i32_0 = arith.constant 0 : i32
    %c0_i32_1 = arith.constant 0 : i32
    return %c0_i32, %c0_i32_0 : i32, i32
  }
  func.func @transform_7(%arg0: i32) -> (i32, i32) {
    %c0_i32 = arith.constant 0 : i32
    %c0_i32_0 = arith.constant 0 : i32
    return %arg0, %c0_i32 : i32, i32
  }
}

</mosaic_0001>

<llo_original>
// kernel: linear_mnist_forward.1
$region0: #{linear_mnist_forward.1}
  #allocation0 [shape = 'u32[]', space=smem, size = 0x4, offset = 0x4, fixed_abs, tag = 'smem constant byte address 0x4 - core index']
  #allocation1 [shape = 'u32[144,128]{1,0:T(1,128)}', space=vmem, size = 0x12000, scoped, tag = 'internal scratch']
  %s0 = inlined_call_operand.vmem [shape: bf16[16,784], index: 0, kind: input, shape index: {}]
  %s1 = inlined_call_operand.hbm [shape: bf16[784,384], index: 1, kind: input, shape index: {}]
  %s2 = inlined_call_operand.vmem [shape: f32[1,384], index: 2, kind: input, shape index: {}]
  %s3 = inlined_call_operand.vmem [shape: bf16[384,128], index: 3, kind: input, shape index: {}]
  %s4 = inlined_call_operand.vmem [shape: f32[1,128], index: 4, kind: input, shape index: {}]
  %s5 = inlined_call_operand.vmem [shape: bf16[128,128], index: 5, kind: input, shape index: {}]
  %s6 = inlined_call_operand.vmem [shape: f32[1,128], index: 6, kind: input, shape index: {}]
  %s7 = inlined_call_operand.hbm [shape: f32[16,128], index: 7, kind: output, shape index: {}]
  %s8 = sld [smem:[#allocation0]]
  $region42: #{linear_mnist_forward.1} parent=0
    _
  %s10 = ssub.s32 1, %s8
  %s11 = scalar_select 0, %s10, %s8
  $region1: #{linear_mnist_forward.1} parent=0
    #allocation2 [shape = 'u8[602112]{0}', space=vmem, size = 0x93000, scoped, tag = 'input window, operand 1, single buffered']
    #allocation3 [shape = 's32[1]{0}', space=sflag, size = 0x4, scoped, tag = 'scoped memory for linear_mnist_forward.1']
    #allocation4 [shape = 's32[1]{0}', space=sflag, size = 0x4, scoped, tag = 'scoped memory for linear_mnist_forward.1']
    #allocation5 [shape = 'u8[8192]{0}', space=vmem, size = 0x2000, scoped, tag = 'output window, operand 0, single buffered']
    %12 = vsyncpa [#allocation3], 0
    %13 = vsyncpa [#allocation4], 0
    // Predicated region
    $region2: #{linear_mnist_forward.1} parent=1 // pred_check
      _
    $region3: #{linear_mnist_forward.1} parent=1 // pred_check_branch
      %15 = sbr.rel (0) target = $region5
    $region4: #{linear_mnist_forward.1} parent=1 // pred_region
      _
    $region5: #{linear_mnist_forward.1} parent=1 // pred_fallthru
      _
    // Predicated region
    $region6: #{linear_mnist_forward.1} parent=1 // pred_check
      _
    $region7: #{linear_mnist_forward.1} parent=1 // pred_check_branch
      %17 = sbr.rel (0) target = $region9
    $region8: #{linear_mnist_forward.1} parent=1 // pred_region
      %s19 = ssub.s32 18816, 18816
      %20 = vsyncadd [#allocation3], %s19
      %s21 = sshll.u32 [#allocation2], 4
      %s22 = int_to_ptr.vmem [resolvable:$true] %s21
      %27 = dma.hbm_to_vmem [thread:$0]  %s1, 18816, %s22, [#allocation3], 192, 192, 12
    $region9: #{linear_mnist_forward.1} parent=1 // pred_fallthru
      _
    // Predicated region
    $region10: #{linear_mnist_forward.1} parent=1 // pred_check
      _
    $region11: #{linear_mnist_forward.1} parent=1 // pred_check_branch
      %29 = sbr.rel (0) target = $region13
    $region12: #{linear_mnist_forward.1} parent=1 // pred_region
      _
    $region13: #{linear_mnist_forward.1} parent=1 // pred_fallthru
      _
    // Predicated region
    $region14: #{linear_mnist_forward.1} parent=1 // pred_check
      _
    $region15: #{linear_mnist_forward.1} parent=1 // pred_check_branch
      %31 = sbr.rel (0) target = $region17
    $region16: #{linear_mnist_forward.1} parent=1 // pred_region
      _
    $region17: #{linear_mnist_forward.1} parent=1 // pred_fallthru
      _
    // Predicated region
    $region18: #{linear_mnist_forward.1} parent=1 // pred_check
      _
    $region19: #{linear_mnist_forward.1} parent=1 // pred_check_branch
      %33 = sbr.rel (0) target = $region21
    $region20: #{linear_mnist_forward.1} parent=1 // pred_region
      _
    $region21: #{linear_mnist_forward.1} parent=1 // pred_fallthru
      _
    // Predicated region
    $region22: #{linear_mnist_forward.1} parent=1 // pred_check
      _
    $region23: #{linear_mnist_forward.1} parent=1 // pred_check_branch
      %35 = sbr.rel (0) target = $region25
    $region24: #{linear_mnist_forward.1} parent=1 // pred_region
      _
    $region25: #{linear_mnist_forward.1} parent=1 // pred_fallthru
      _
    // Predicated region
    $region26: #{linear_mnist_forward.1} parent=1 // pred_check
      _
    $region27: #{linear_mnist_forward.1} parent=1 // pred_check_branch
      %37 = sbr.rel (0) target = $region29
    $region28: #{linear_mnist_forward.1} parent=1 // pred_region
      _
    $region29: #{linear_mnist_forward.1} parent=1 // pred_fallthru
      _
    // Predicated region
    $region30: #{linear_mnist_forward.1} parent=1 // pred_check
      _
    $region31: #{linear_mnist_forward.1} parent=1 // pred_check_branch
      %39 = sbr.rel (0) target = $region33
    $region32: #{linear_mnist_forward.1} parent=1 // pred_region
      %40 = dma.done [#allocation3], 18816
    $region33: #{linear_mnist_forward.1} parent=1 // pred_fallthru
      _
    %v42 = vld [vmem:[%s0] sm:$0xff]
    %v43 = vld [vmem:[%s0 + $0x8] sm:$0xff]
    %v44 = vld [vmem:[%s0 + $0x10] sm:$0xff]
    %v45 = vld [vmem:[%s0 + $0x18] sm:$0xf]
    %v46 = vld [vmem:[%s0 + $0x1c] sm:$0xff]
    %v47 = vld [vmem:[%s0 + $0x24] sm:$0xff]
    %v48 = vld [vmem:[%s0 + $0x2c] sm:$0xff]
    %v49 = vld [vmem:[%s0 + $0x34] sm:$0xf]
    %v50 = vld [vmem:[#allocation2] sm:$0xff]
    %v51 = vld [vmem:[#allocation2 + $0x8] sm:$0xf]
    %v52 = vld [vmem:[#allocation2 + $0xc] sm:$0xff]
    %v53 = vld [vmem:[#allocation2 + $0x14] sm:$0xf]
    %v54 = vld [vmem:[#allocation2 + $0x18] sm:$0xff]
    %v55 = vld [vmem:[#allocation2 + $0x20] sm:$0xf]
    %v56 = vld [vmem:[#allocation2 + $0x24] sm:$0xff]
    %v57 = vld [vmem:[#allocation2 + $0x2c] sm:$0xf]
    %v58 = vld [vmem:[#allocation2 + $0x30] sm:$0xff]
    %v59 = vld [vmem:[#allocation2 + $0x38] sm:$0xf]
    %v60 = vld [vmem:[#allocation2 + $0x3c] sm:$0xff]
    %v61 = vld [vmem:[#allocation2 + $0x44] sm:$0xf]
    %v62 = vld [vmem:[#allocation2 + $0x48] sm:$0xff]
    %v63 = vld [vmem:[#allocation2 + $0x50] sm:$0xf]
    %v64 = vld [vmem:[#allocation2 + $0x54] sm:$0xff]
    %v65 = vld [vmem:[#allocation2 + $0x5c] sm:$0xf]
    %v66 = vld [vmem:[#allocation2 + $0x60] sm:$0xff]
    %v67 = vld [vmem:[#allocation2 + $0x68] sm:$0xf]
    %v68 = vld [vmem:[#allocation2 + $0x6c] sm:$0xff]
    %v69 = vld [vmem:[#allocation2 + $0x74] sm:$0xf]
    %v70 = vld [vmem:[#allocation2 + $0x78] sm:$0xff]
    %v71 = vld [vmem:[#allocation2 + $0x80] sm:$0xf]
    %v72 = vld [vmem:[#allocation2 + $0x84] sm:$0xff]
    %v73 = vld [vmem:[#allocation2 + $0x8c] sm:$0xf]
    %v74 = vld [vmem:[#allocation2 + $0x90] sm:$0xff]
    %v75 = vld [vmem:[#allocation2 + $0x98] sm:$0xf]
    %v76 = vld [vmem:[#allocation2 + $0x9c] sm:$0xff]
    %v77 = vld [vmem:[#allocation2 + $0xa4] sm:$0xf]
    %v78 = vld [vmem:[#allocation2 + $0xa8] sm:$0xff]
    %v79 = vld [vmem:[#allocation2 + $0xb0] sm:$0xf]
    %v80 = vld [vmem:[#allocation2 + $0xb4] sm:$0xff]
    %v81 = vld [vmem:[#allocation2 + $0xbc] sm:$0xf]
    %v82 = vld [vmem:[#allocation2 + $0xc0] sm:$0xff]
    %v83 = vld [vmem:[#allocation2 + $0xc8] sm:$0xf]
    %v84 = vld [vmem:[#allocation2 + $0xcc] sm:$0xff]
    %v85 = vld [vmem:[#allocation2 + $0xd4] sm:$0xf]
    %v86 = vld [vmem:[#allocation2 + $0xd8] sm:$0xff]
    %v87 = vld [vmem:[#allocation2 + $0xe0] sm:$0xf]
    %v88 = vld [vmem:[#allocation2 + $0xe4] sm:$0xff]
    %v89 = vld [vmem:[#allocation2 + $0xec] sm:$0xf]
    %v90 = vld [vmem:[#allocation2 + $0xf0] sm:$0xff]
    %v91 = vld [vmem:[#allocation2 + $0xf8] sm:$0xf]
    %v92 = vld [vmem:[#allocation2 + $0xfc] sm:$0xff]
    %v93 = vld [vmem:[#allocation2 + $0x104] sm:$0xf]
    %v94 = vld [vmem:[#allocation2 + $0x108] sm:$0xff]
    %v95 = vld [vmem:[#allocation2 + $0x110] sm:$0xf]
    %v96 = vld [vmem:[#allocation2 + $0x114] sm:$0xff]
    %v97 = vld [vmem:[#allocation2 + $0x11c] sm:$0xf]
    %v98 = vld [vmem:[#allocation2 + $0x120] sm:$0xff]
    %v99 = vld [vmem:[#allocation2 + $0x128] sm:$0xf]
    %v100 = vld [vmem:[#allocation2 + $0x12c] sm:$0xff]
    %v101 = vld [vmem:[#allocation2 + $0x134] sm:$0xf]
    %v102 = vld [vmem:[#allocation2 + $0x138] sm:$0xff]
    %v103 = vld [vmem:[#allocation2 + $0x140] sm:$0xf]
    %v104 = vld [vmem:[#allocation2 + $0x144] sm:$0xff]
    %v105 = vld [vmem:[#allocation2 + $0x14c] sm:$0xf]
    %v106 = vld [vmem:[#allocation2 + $0x150] sm:$0xff]
    %v107 = vld [vmem:[#allocation2 + $0x158] sm:$0xf]
    %v108 = vld [vmem:[#allocation2 + $0x15c] sm:$0xff]
    %v109 = vld [vmem:[#allocation2 + $0x164] sm:$0xf]
    %v110 = vld [vmem:[#allocation2 + $0x168] sm:$0xff]
    %v111 = vld [vmem:[#allocation2 + $0x170] sm:$0xf]
    %v112 = vld [vmem:[#allocation2 + $0x174] sm:$0xff]
    %v113 = vld [vmem:[#allocation2 + $0x17c] sm:$0xf]
    %v114 = vld [vmem:[#allocation2 + $0x180] sm:$0xff]
    %v115 = vld [vmem:[#allocation2 + $0x188] sm:$0xf]
    %v116 = vld [vmem:[#allocation2 + $0x18c] sm:$0xff]
    %v117 = vld [vmem:[#allocation2 + $0x194] sm:$0xf]
    %v118 = vld [vmem:[#allocation2 + $0x198] sm:$0xff]
    %v119 = vld [vmem:[#allocation2 + $0x1a0] sm:$0xf]
    %v120 = vld [vmem:[#allocation2 + $0x1a4] sm:$0xff]
    %v121 = vld [vmem:[#allocation2 + $0x1ac] sm:$0xf]
    %v122 = vld [vmem:[#allocation2 + $0x1b0] sm:$0xff]
    %v123 = vld [vmem:[#allocation2 + $0x1b8] sm:$0xf]
    %v124 = vld [vmem:[#allocation2 + $0x1bc] sm:$0xff]
    %v125 = vld [vmem:[#allocation2 + $0x1c4] sm:$0xf]
    %v126 = vld [vmem:[#allocation2 + $0x1c8] sm:$0xff]
    %v127 = vld [vmem:[#allocation2 + $0x1d0] sm:$0xf]
    %v128 = vld [vmem:[#allocation2 + $0x1d4] sm:$0xff]
    %v129 = vld [vmem:[#allocation2 + $0x1dc] sm:$0xf]
    %v130 = vld [vmem:[#allocation2 + $0x1e0] sm:$0xff]
    %v131 = vld [vmem:[#allocation2 + $0x1e8] sm:$0xf]
    %v132 = vld [vmem:[#allocation2 + $0x1ec] sm:$0xff]
    %v133 = vld [vmem:[#allocation2 + $0x1f4] sm:$0xf]
    %v134 = vld [vmem:[#allocation2 + $0x1f8] sm:$0xff]
    %v135 = vld [vmem:[#allocation2 + $0x200] sm:$0xf]
    %v136 = vld [vmem:[#allocation2 + $0x204] sm:$0xff]
    %v137 = vld [vmem:[#allocation2 + $0x20c] sm:$0xf]
    %v138 = vld [vmem:[#allocation2 + $0x210] sm:$0xff]
    %v139 = vld [vmem:[#allocation2 + $0x218] sm:$0xf]
    %v140 = vld [vmem:[#allocation2 + $0x21c] sm:$0xff]
    %v141 = vld [vmem:[#allocation2 + $0x224] sm:$0xf]
    %v142 = vld [vmem:[#allocation2 + $0x228] sm:$0xff]
    %v143 = vld [vmem:[#allocation2 + $0x230] sm:$0xf]
    %v144 = vld [vmem:[#allocation2 + $0x234] sm:$0xff]
    %v145 = vld [vmem:[#allocation2 + $0x23c] sm:$0xf]
    %v146 = vld [vmem:[#allocation2 + $0x240] sm:$0xff]
    %v147 = vld [vmem:[#allocation2 + $0x248] sm:$0xf]
    %v148 = vld [vmem:[#allocation2 + $0x24c] sm:$0xff]
    %v149 = vld [vmem:[#allocation2 + $0x254] sm:$0xf]
    %v150 = vld [vmem:[#allocation2 + $0x258] sm:$0xff]
    %v151 = vld [vmem:[#allocation2 + $0x260] sm:$0xf]
    %v152 = vld [vmem:[#allocation2 + $0x264] sm:$0xff]
    %v153 = vld [vmem:[#allocation2 + $0x26c] sm:$0xf]
    %v154 = vld [vmem:[#allocation2 + $0x270] sm:$0xff]
    %v155 = vld [vmem:[#allocation2 + $0x278] sm:$0xf]
    %v156 = vld [vmem:[#allocation2 + $0x27c] sm:$0xff]
    %v157 = vld [vmem:[#allocation2 + $0x284] sm:$0xf]
    %v158 = vld [vmem:[#allocation2 + $0x288] sm:$0xff]
    %v159 = vld [vmem:[#allocation2 + $0x290] sm:$0xf]
    %v160 = vld [vmem:[#allocation2 + $0x294] sm:$0xff]
    %v161 = vld [vmem:[#allocation2 + $0x29c] sm:$0xf]
    %v162 = vld [vmem:[#allocation2 + $0x2a0] sm:$0xff]
    %v163 = vld [vmem:[#allocation2 + $0x2a8] sm:$0xf]
    %v164 = vld [vmem:[#allocation2 + $0x2ac] sm:$0xff]
    %v165 = vld [vmem:[#allocation2 + $0x2b4] sm:$0xf]
    %v166 = vld [vmem:[#allocation2 + $0x2b8] sm:$0xff]
    %v167 = vld [vmem:[#allocation2 + $0x2c0] sm:$0xf]
    %v168 = vld [vmem:[#allocation2 + $0x2c4] sm:$0xff]
    %v169 = vld [vmem:[#allocation2 + $0x2cc] sm:$0xf]
    %v170 = vld [vmem:[#allocation2 + $0x2d0] sm:$0xff]
    %v171 = vld [vmem:[#allocation2 + $0x2d8] sm:$0xf]
    %v172 = vld [vmem:[#allocation2 + $0x2dc] sm:$0xff]
    %v173 = vld [vmem:[#allocation2 + $0x2e4] sm:$0xf]
    %v174 = vld [vmem:[#allocation2 + $0x2e8] sm:$0xff]
    %v175 = vld [vmem:[#allocation2 + $0x2f0] sm:$0xf]
    %v176 = vld [vmem:[#allocation2 + $0x2f4] sm:$0xff]
    %v177 = vld [vmem:[#allocation2 + $0x2fc] sm:$0xf]
    %v178 = vld [vmem:[#allocation2 + $0x300] sm:$0xff]
    %v179 = vld [vmem:[#allocation2 + $0x308] sm:$0xf]
    %v180 = vld [vmem:[#allocation2 + $0x30c] sm:$0xff]
    %v181 = vld [vmem:[#allocation2 + $0x314] sm:$0xf]
    %v182 = vld [vmem:[#allocation2 + $0x318] sm:$0xff]
    %v183 = vld [vmem:[#allocation2 + $0x320] sm:$0xf]
    %v184 = vld [vmem:[#allocation2 + $0x324] sm:$0xff]
    %v185 = vld [vmem:[#allocation2 + $0x32c] sm:$0xf]
    %v186 = vld [vmem:[#allocation2 + $0x330] sm:$0xff]
    %v187 = vld [vmem:[#allocation2 + $0x338] sm:$0xf]
    %v188 = vld [vmem:[#allocation2 + $0x33c] sm:$0xff]
    %v189 = vld [vmem:[#allocation2 + $0x344] sm:$0xf]
    %v190 = vld [vmem:[#allocation2 + $0x348] sm:$0xff]
    %v191 = vld [vmem:[#allocation2 + $0x350] sm:$0xf]
    %v192 = vld [vmem:[#allocation2 + $0x354] sm:$0xff]
    %v193 = vld [vmem:[#allocation2 + $0x35c] sm:$0xf]
    %v194 = vld [vmem:[#allocation2 + $0x360] sm:$0xff]
    %v195 = vld [vmem:[#allocation2 + $0x368] sm:$0xf]
    %v196 = vld [vmem:[#allocation2 + $0x36c] sm:$0xff]
    %v197 = vld [vmem:[#allocation2 + $0x374] sm:$0xf]
    %v198 = vld [vmem:[#allocation2 + $0x378] sm:$0xff]
    %v199 = vld [vmem:[#allocation2 + $0x380] sm:$0xf]
    %v200 = vld [vmem:[#allocation2 + $0x384] sm:$0xff]
    %v201 = vld [vmem:[#allocation2 + $0x38c] sm:$0xf]
    %v202 = vld [vmem:[#allocation2 + $0x390] sm:$0xff]
    %v203 = vld [vmem:[#allocation2 + $0x398] sm:$0xf]
    %v204 = vld [vmem:[#allocation2 + $0x39c] sm:$0xff]
    %v205 = vld [vmem:[#allocation2 + $0x3a4] sm:$0xf]
    %v206 = vld [vmem:[#allocation2 + $0x3a8] sm:$0xff]
    %v207 = vld [vmem:[#allocation2 + $0x3b0] sm:$0xf]
    %v208 = vld [vmem:[#allocation2 + $0x3b4] sm:$0xff]
    %v209 = vld [vmem:[#allocation2 + $0x3bc] sm:$0xf]
    %v210 = vld [vmem:[#allocation2 + $0x3c0] sm:$0xff]
    %v211 = vld [vmem:[#allocation2 + $0x3c8] sm:$0xf]
    %v212 = vld [vmem:[#allocation2 + $0x3cc] sm:$0xff]
    %v213 = vld [vmem:[#allocation2 + $0x3d4] sm:$0xf]
    %v214 = vld [vmem:[#allocation2 + $0x3d8] sm:$0xff]
    %v215 = vld [vmem:[#allocation2 + $0x3e0] sm:$0xf]
    %v216 = vld [vmem:[#allocation2 + $0x3e4] sm:$0xff]
    %v217 = vld [vmem:[#allocation2 + $0x3ec] sm:$0xf]
    %v218 = vld [vmem:[#allocation2 + $0x3f0] sm:$0xff]
    %v219 = vld [vmem:[#allocation2 + $0x3f8] sm:$0xf]
    %v220 = vld [vmem:[#allocation2 + $0x3fc] sm:$0xff]
    %v221 = vld [vmem:[#allocation2 + $0x404] sm:$0xf]
    %v222 = vld [vmem:[#allocation2 + $0x408] sm:$0xff]
    %v223 = vld [vmem:[#allocation2 + $0x410] sm:$0xf]
    %v224 = vld [vmem:[#allocation2 + $0x414] sm:$0xff]
    %v225 = vld [vmem:[#allocation2 + $0x41c] sm:$0xf]
    %v226 = vld [vmem:[#allocation2 + $0x420] sm:$0xff]
    %v227 = vld [vmem:[#allocation2 + $0x428] sm:$0xf]
    %v228 = vld [vmem:[#allocation2 + $0x42c] sm:$0xff]
    %v229 = vld [vmem:[#allocation2 + $0x434] sm:$0xf]
    %v230 = vld [vmem:[#allocation2 + $0x438] sm:$0xff]
    %v231 = vld [vmem:[#allocation2 + $0x440] sm:$0xf]
    %v232 = vld [vmem:[#allocation2 + $0x444] sm:$0xff]
    %v233 = vld [vmem:[#allocation2 + $0x44c] sm:$0xf]
    %v234 = vld [vmem:[#allocation2 + $0x450] sm:$0xff]
    %v235 = vld [vmem:[#allocation2 + $0x458] sm:$0xf]
    %v236 = vld [vmem:[#allocation2 + $0x45c] sm:$0xff]
    %v237 = vld [vmem:[#allocation2 + $0x464] sm:$0xf]
    %v238 = vld [vmem:[#allocation2 + $0x468] sm:$0xff]
    %v239 = vld [vmem:[#allocation2 + $0x470] sm:$0xf]
    %v240 = vld [vmem:[#allocation2 + $0x474] sm:$0xff]
    %v241 = vld [vmem:[#allocation2 + $0x47c] sm:$0xf]
    %v242 = vld [vmem:[#allocation2 + $0x480] sm:$0xff]
    %v243 = vld [vmem:[#allocation2 + $0x488] sm:$0xf]
    %v244 = vld [vmem:[#allocation2 + $0x48c] sm:$0xff]
    %v245 = vld [vmem:[#allocation2 + $0x494] sm:$0xf]
    %v246 = vld [vmem:[%s2] sm:$0x7]
    %v248 = vlaneseq
    %v249 = vshrl.u32 %v248, 7
    %v250 = vsub.s32 0, %v249
    %v251 = vrot.slane %v246, %v250
    %v252 = vlaneseq
    %v253 = vshrl.u32 %v252, 7
    %v254 = vsub.s32 1, %v253
    %v255 = vrot.slane %v246, %v254
    %v256 = vlaneseq
    %v257 = vshrl.u32 %v256, 7
    %v258 = vsub.s32 2, %v257
    %v259 = vrot.slane %v246, %v258
    %v271 = vunpack.c.l.b16 %v42
    %v272 = vunpack.c.h.b16 %v42
    %v273 = vunpack.c.l.b16 %v43
    %v274 = vunpack.c.h.b16 %v43
    %v275 = vunpack.c.l.b16 %v44
    %v276 = vunpack.c.h.b16 %v44
    %v277 = vunpack.c.l.b16 %v45
    %v278 = vunpack.c.l.b16 %v46
    %v279 = vunpack.c.h.b16 %v46
    %v280 = vunpack.c.l.b16 %v47
    %v281 = vunpack.c.h.b16 %v47
    %v282 = vunpack.c.l.b16 %v48
    %v283 = vunpack.c.h.b16 %v48
    %v284 = vunpack.c.l.b16 %v49
    %v285 = vpack.c.b16 %v278, %v271
    %v286 = vpack.c.b16 %v279, %v272
    %v287 = vpack.c.b16 %v280, %v273
    %v288 = vpack.c.b16 %v281, %v274
    %v289 = vpack.c.b16 %v282, %v275
    %v290 = vpack.c.b16 %v283, %v276
    %v291 = vpack.c.b16 %v284, %v277
    %v494 = vunpack.c.l.b16 %v50
    %v495 = vunpack.c.h.b16 %v50
    %v496 = vunpack.c.l.b16 %v51
    %v497 = vunpack.c.l.b16 %v52
    %v498 = vunpack.c.h.b16 %v52
    %v499 = vunpack.c.l.b16 %v53
    %v500 = vunpack.c.l.b16 %v54
    %v501 = vunpack.c.h.b16 %v54
    %v502 = vunpack.c.l.b16 %v55
    %v503 = vunpack.c.l.b16 %v56
    %v504 = vunpack.c.h.b16 %v56
    %v505 = vunpack.c.l.b16 %v57
    %v506 = vunpack.c.l.b16 %v58
    %v507 = vunpack.c.h.b16 %v58
    %v508 = vunpack.c.l.b16 %v59
    %v509 = vunpack.c.l.b16 %v60
    %v510 = vunpack.c.h.b16 %v60
    %v511 = vunpack.c.l.b16 %v61
    %v512 = vunpack.c.l.b16 %v62
    %v513 = vunpack.c.h.b16 %v62
    %v514 = vunpack.c.l.b16 %v63
    %v515 = vunpack.c.l.b16 %v64
    %v516 = vunpack.c.h.b16 %v64
    %v517 = vunpack.c.l.b16 %v65
    %v518 = vunpack.c.l.b16 %v66
    %v519 = vunpack.c.h.b16 %v66
    %v520 = vunpack.c.l.b16 %v67
    %v521 = vunpack.c.l.b16 %v68
    %v522 = vunpack.c.h.b16 %v68
    %v523 = vunpack.c.l.b16 %v69
    %v524 = vunpack.c.l.b16 %v70
    %v525 = vunpack.c.h.b16 %v70
    %v526 = vunpack.c.l.b16 %v71
    %v527 = vunpack.c.l.b16 %v72
    %v528 = vunpack.c.h.b16 %v72
    %v529 = vunpack.c.l.b16 %v73
    %v530 = vunpack.c.l.b16 %v74
    %v531 = vunpack.c.h.b16 %v74
    %v532 = vunpack.c.l.b16 %v75
    %v533 = vunpack.c.l.b16 %v76
    %v534 = vunpack.c.h.b16 %v76
    %v535 = vunpack.c.l.b16 %v77
    %v536 = vunpack.c.l.b16 %v78
    %v537 = vunpack.c.h.b16 %v78
    %v538 = vunpack.c.l.b16 %v79
    %v539 = vunpack.c.l.b16 %v80
    %v540 = vunpack.c.h.b16 %v80
    %v541 = vunpack.c.l.b16 %v81
    %v542 = vunpack.c.l.b16 %v82
    %v543 = vunpack.c.h.b16 %v82
    %v544 = vunpack.c.l.b16 %v83
    %v545 = vunpack.c.l.b16 %v84
    %v546 = vunpack.c.h.b16 %v84
    %v547 = vunpack.c.l.b16 %v85
    %v548 = vunpack.c.l.b16 %v86
    %v549 = vunpack.c.h.b16 %v86
    %v550 = vunpack.c.l.b16 %v87
    %v551 = vunpack.c.l.b16 %v88
    %v552 = vunpack.c.h.b16 %v88
    %v553 = vunpack.c.l.b16 %v89
    %v554 = vunpack.c.l.b16 %v90
    %v555 = vunpack.c.h.b16 %v90
    %v556 = vunpack.c.l.b16 %v91
    %v557 = vunpack.c.l.b16 %v92
    %v558 = vunpack.c.h.b16 %v92
    %v559 = vunpack.c.l.b16 %v93
    %v560 = vunpack.c.l.b16 %v94
    %v561 = vunpack.c.h.b16 %v94
    %v562 = vunpack.c.l.b16 %v95
    %v563 = vunpack.c.l.b16 %v96
    %v564 = vunpack.c.h.b16 %v96
    %v565 = vunpack.c.l.b16 %v97
    %v566 = vunpack.c.l.b16 %v98
    %v567 = vunpack.c.h.b16 %v98
    %v568 = vunpack.c.l.b16 %v99
    %v569 = vunpack.c.l.b16 %v100
    %v570 = vunpack.c.h.b16 %v100
    %v571 = vunpack.c.l.b16 %v101
    %v572 = vunpack.c.l.b16 %v102
    %v573 = vunpack.c.h.b16 %v102
    %v574 = vunpack.c.l.b16 %v103
    %v575 = vunpack.c.l.b16 %v104
    %v576 = vunpack.c.h.b16 %v104
    %v577 = vunpack.c.l.b16 %v105
    %v578 = vunpack.c.l.b16 %v106
    %v579 = vunpack.c.h.b16 %v106
    %v580 = vunpack.c.l.b16 %v107
    %v581 = vunpack.c.l.b16 %v108
    %v582 = vunpack.c.h.b16 %v108
    %v583 = vunpack.c.l.b16 %v109
    %v584 = vunpack.c.l.b16 %v110
    %v585 = vunpack.c.h.b16 %v110
    %v586 = vunpack.c.l.b16 %v111
    %v587 = vunpack.c.l.b16 %v112
    %v588 = vunpack.c.h.b16 %v112
    %v589 = vunpack.c.l.b16 %v113
    %v590 = vunpack.c.l.b16 %v114
    %v591 = vunpack.c.h.b16 %v114
    %v592 = vunpack.c.l.b16 %v115
    %v593 = vunpack.c.l.b16 %v116
    %v594 = vunpack.c.h.b16 %v116
    %v595 = vunpack.c.l.b16 %v117
    %v596 = vunpack.c.l.b16 %v118
    %v597 = vunpack.c.h.b16 %v118
    %v598 = vunpack.c.l.b16 %v119
    %v599 = vunpack.c.l.b16 %v120
    %v600 = vunpack.c.h.b16 %v120
    %v601 = vunpack.c.l.b16 %v121
    %v602 = vunpack.c.l.b16 %v122
    %v603 = vunpack.c.h.b16 %v122
    %v604 = vunpack.c.l.b16 %v123
    %v605 = vunpack.c.l.b16 %v124
    %v606 = vunpack.c.h.b16 %v124
    %v607 = vunpack.c.l.b16 %v125
    %v608 = vunpack.c.l.b16 %v126
    %v609 = vunpack.c.h.b16 %v126
    %v610 = vunpack.c.l.b16 %v127
    %v611 = vunpack.c.l.b16 %v128
    %v612 = vunpack.c.h.b16 %v128
    %v613 = vunpack.c.l.b16 %v129
    %v614 = vunpack.c.l.b16 %v130
    %v615 = vunpack.c.h.b16 %v130
    %v616 = vunpack.c.l.b16 %v131
    %v617 = vunpack.c.l.b16 %v132
    %v618 = vunpack.c.h.b16 %v132
    %v619 = vunpack.c.l.b16 %v133
    %v620 = vunpack.c.l.b16 %v134
    %v621 = vunpack.c.h.b16 %v134
    %v622 = vunpack.c.l.b16 %v135
    %v623 = vunpack.c.l.b16 %v136
    %v624 = vunpack.c.h.b16 %v136
    %v625 = vunpack.c.l.b16 %v137
    %v626 = vunpack.c.l.b16 %v138
    %v627 = vunpack.c.h.b16 %v138
    %v628 = vunpack.c.l.b16 %v139
    %v629 = vunpack.c.l.b16 %v140
    %v630 = vunpack.c.h.b16 %v140
    %v631 = vunpack.c.l.b16 %v141
    %v632 = vunpack.c.l.b16 %v142
    %v633 = vunpack.c.h.b16 %v142
    %v634 = vunpack.c.l.b16 %v143
    %v635 = vunpack.c.l.b16 %v144
    %v636 = vunpack.c.h.b16 %v144
    %v637 = vunpack.c.l.b16 %v145
    %v638 = vunpack.c.l.b16 %v146
    %v639 = vunpack.c.h.b16 %v146
    %v640 = vunpack.c.l.b16 %v147
    %v641 = vunpack.c.l.b16 %v148
    %v642 = vunpack.c.h.b16 %v148
    %v643 = vunpack.c.l.b16 %v149
    %v644 = vunpack.c.l.b16 %v150
    %v645 = vunpack.c.h.b16 %v150
    %v646 = vunpack.c.l.b16 %v151
    %v647 = vunpack.c.l.b16 %v152
    %v648 = vunpack.c.h.b16 %v152
    %v649 = vunpack.c.l.b16 %v153
    %v650 = vunpack.c.l.b16 %v154
    %v651 = vunpack.c.h.b16 %v154
    %v652 = vunpack.c.l.b16 %v155
    %v653 = vunpack.c.l.b16 %v156
    %v654 = vunpack.c.h.b16 %v156
    %v655 = vunpack.c.l.b16 %v157
    %v656 = vunpack.c.l.b16 %v158
    %v657 = vunpack.c.h.b16 %v158
    %v658 = vunpack.c.l.b16 %v159
    %v659 = vunpack.c.l.b16 %v160
    %v660 = vunpack.c.h.b16 %v160
    %v661 = vunpack.c.l.b16 %v161
    %v662 = vunpack.c.l.b16 %v162
    %v663 = vunpack.c.h.b16 %v162
    %v664 = vunpack.c.l.b16 %v163
    %v665 = vunpack.c.l.b16 %v164
    %v666 = vunpack.c.h.b16 %v164
    %v667 = vunpack.c.l.b16 %v165
    %v668 = vunpack.c.l.b16 %v166
    %v669 = vunpack.c.h.b16 %v166
    %v670 = vunpack.c.l.b16 %v167
    %v671 = vunpack.c.l.b16 %v168
    %v672 = vunpack.c.h.b16 %v168
    %v673 = vunpack.c.l.b16 %v169
    %v674 = vunpack.c.l.b16 %v170
    %v675 = vunpack.c.h.b16 %v170
    %v676 = vunpack.c.l.b16 %v171
    %v677 = vunpack.c.l.b16 %v172
    %v678 = vunpack.c.h.b16 %v172
    %v679 = vunpack.c.l.b16 %v173
    %v680 = vunpack.c.l.b16 %v174
    %v681 = vunpack.c.h.b16 %v174
    %v682 = vunpack.c.l.b16 %v175
    %v683 = vunpack.c.l.b16 %v176
    %v684 = vunpack.c.h.b16 %v176
    %v685 = vunpack.c.l.b16 %v177
    %v686 = vunpack.c.l.b16 %v178
    %v687 = vunpack.c.h.b16 %v178
    %v688 = vunpack.c.l.b16 %v179
    %v689 = vunpack.c.l.b16 %v180
    %v690 = vunpack.c.h.b16 %v180
    %v691 = vunpack.c.l.b16 %v181
    %v692 = vunpack.c.l.b16 %v182
    %v693 = vunpack.c.h.b16 %v182
    %v694 = vunpack.c.l.b16 %v183
    %v695 = vunpack.c.l.b16 %v184
    %v696 = vunpack.c.h.b16 %v184
    %v697 = vunpack.c.l.b16 %v185
    %v698 = vunpack.c.l.b16 %v186
    %v699 = vunpack.c.h.b16 %v186
    %v700 = vunpack.c.l.b16 %v187
    %v701 = vunpack.c.l.b16 %v188
    %v702 = vunpack.c.h.b16 %v188
    %v703 = vunpack.c.l.b16 %v189
    %v704 = vunpack.c.l.b16 %v190
    %v705 = vunpack.c.h.b16 %v190
    %v706 = vunpack.c.l.b16 %v191
    %v707 = vunpack.c.l.b16 %v192
    %v708 = vunpack.c.h.b16 %v192
    %v709 = vunpack.c.l.b16 %v193
    %v710 = vunpack.c.l.b16 %v194
    %v711 = vunpack.c.h.b16 %v194
    %v712 = vunpack.c.l.b16 %v195
    %v713 = vunpack.c.l.b16 %v196
    %v714 = vunpack.c.h.b16 %v196
    %v715 = vunpack.c.l.b16 %v197
    %v716 = vunpack.c.l.b16 %v198
    %v717 = vunpack.c.h.b16 %v198
    %v718 = vunpack.c.l.b16 %v199
    %v719 = vunpack.c.l.b16 %v200
    %v720 = vunpack.c.h.b16 %v200
    %v721 = vunpack.c.l.b16 %v201
    %v722 = vunpack.c.l.b16 %v202
    %v723 = vunpack.c.h.b16 %v202
    %v724 = vunpack.c.l.b16 %v203
    %v725 = vunpack.c.l.b16 %v204
    %v726 = vunpack.c.h.b16 %v204
    %v727 = vunpack.c.l.b16 %v205
    %v728 = vunpack.c.l.b16 %v206
    %v729 = vunpack.c.h.b16 %v206
    %v730 = vunpack.c.l.b16 %v207
    %v731 = vunpack.c.l.b16 %v208
    %v732 = vunpack.c.h.b16 %v208
    %v733 = vunpack.c.l.b16 %v209
    %v734 = vunpack.c.l.b16 %v210
    %v735 = vunpack.c.h.b16 %v210
    %v736 = vunpack.c.l.b16 %v211
    %v737 = vunpack.c.l.b16 %v212
    %v738 = vunpack.c.h.b16 %v212
    %v739 = vunpack.c.l.b16 %v213
    %v740 = vunpack.c.l.b16 %v214
    %v741 = vunpack.c.h.b16 %v214
    %v742 = vunpack.c.l.b16 %v215
    %v743 = vunpack.c.l.b16 %v216
    %v744 = vunpack.c.h.b16 %v216
    %v745 = vunpack.c.l.b16 %v217
    %v746 = vunpack.c.l.b16 %v218
    %v747 = vunpack.c.h.b16 %v218
    %v748 = vunpack.c.l.b16 %v219
    %v749 = vunpack.c.l.b16 %v220
    %v750 = vunpack.c.h.b16 %v220
    %v751 = vunpack.c.l.b16 %v221
    %v752 = vunpack.c.l.b16 %v222
    %v753 = vunpack.c.h.b16 %v222
    %v754 = vunpack.c.l.b16 %v223
    %v755 = vunpack.c.l.b16 %v224
    %v756 = vunpack.c.h.b16 %v224
    %v757 = vunpack.c.l.b16 %v225
    %v758 = vunpack.c.l.b16 %v226
    %v759 = vunpack.c.h.b16 %v226
    %v760 = vunpack.c.l.b16 %v227
    %v761 = vunpack.c.l.b16 %v228
    %v762 = vunpack.c.h.b16 %v228
    %v763 = vunpack.c.l.b16 %v229
    %v764 = vunpack.c.l.b16 %v230
    %v765 = vunpack.c.h.b16 %v230
    %v766 = vunpack.c.l.b16 %v231
    %v767 = vunpack.c.l.b16 %v232
    %v768 = vunpack.c.h.b16 %v232
    %v769 = vunpack.c.l.b16 %v233
    %v770 = vunpack.c.l.b16 %v234
    %v771 = vunpack.c.h.b16 %v234
    %v772 = vunpack.c.l.b16 %v235
    %v773 = vunpack.c.l.b16 %v236
    %v774 = vunpack.c.h.b16 %v236
    %v775 = vunpack.c.l.b16 %v237
    %v776 = vunpack.c.l.b16 %v238
    %v777 = vunpack.c.h.b16 %v238
    %v778 = vunpack.c.l.b16 %v239
    %v779 = vunpack.c.l.b16 %v240
    %v780 = vunpack.c.h.b16 %v240
    %v781 = vunpack.c.l.b16 %v241
    %v782 = vunpack.c.l.b16 %v242
    %v783 = vunpack.c.h.b16 %v242
    %v784 = vunpack.c.l.b16 %v243
    %v785 = vunpack.c.l.b16 %v244
    %v786 = vunpack.c.h.b16 %v244
    %v787 = vunpack.c.l.b16 %v245
    %v788 = vpack.c.b16 %v497, %v494
    %v789 = vpack.c.b16 %v498, %v495
    %v790 = vpack.c.b16 %v499, %v496
    %v791 = vpack.c.b16 %v503, %v500
    %v792 = vpack.c.b16 %v504, %v501
    %v793 = vpack.c.b16 %v505, %v502
    %v794 = vpack.c.b16 %v509, %v506
    %v795 = vpack.c.b16 %v510, %v507
    %v796 = vpack.c.b16 %v511, %v508
    %v797 = vpack.c.b16 %v515, %v512
    %v798 = vpack.c.b16 %v516, %v513
    %v799 = vpack.c.b16 %v517, %v514
    %v800 = vpack.c.b16 %v521, %v518
    %v801 = vpack.c.b16 %v522, %v519
    %v802 = vpack.c.b16 %v523, %v520
    %v803 = vpack.c.b16 %v527, %v524
    %v804 = vpack.c.b16 %v528, %v525
    %v805 = vpack.c.b16 %v529, %v526
    %v806 = vpack.c.b16 %v533, %v530
    %v807 = vpack.c.b16 %v534, %v531
    %v808 = vpack.c.b16 %v535, %v532
    %v809 = vpack.c.b16 %v539, %v536
    %v810 = vpack.c.b16 %v540, %v537
    %v811 = vpack.c.b16 %v541, %v538
    %v812 = vpack.c.b16 %v545, %v542
    %v813 = vpack.c.b16 %v546, %v543
    %v814 = vpack.c.b16 %v547, %v544
    %v815 = vpack.c.b16 %v551, %v548
    %v816 = vpack.c.b16 %v552, %v549
    %v817 = vpack.c.b16 %v553, %v550
    %v818 = vpack.c.b16 %v557, %v554
    %v819 = vpack.c.b16 %v558, %v555
    %v820 = vpack.c.b16 %v559, %v556
    %v821 = vpack.c.b16 %v563, %v560
    %v822 = vpack.c.b16 %v564, %v561
    %v823 = vpack.c.b16 %v565, %v562
    %v824 = vpack.c.b16 %v569, %v566
    %v825 = vpack.c.b16 %v570, %v567
    %v826 = vpack.c.b16 %v571, %v568
    %v827 = vpack.c.b16 %v575, %v572
    %v828 = vpack.c.b16 %v576, %v573
    %v829 = vpack.c.b16 %v577, %v574
    %v830 = vpack.c.b16 %v581, %v578
    %v831 = vpack.c.b16 %v582, %v579
    %v832 = vpack.c.b16 %v583, %v580
    %v833 = vpack.c.b16 %v587, %v584
    %v834 = vpack.c.b16 %v588, %v585
    %v835 = vpack.c.b16 %v589, %v586
    %v836 = vpack.c.b16 %v593, %v590
    %v837 = vpack.c.b16 %v594, %v591
    %v838 = vpack.c.b16 %v595, %v592
    %v839 = vpack.c.b16 %v599, %v596
    %v840 = vpack.c.b16 %v600, %v597
    %v841 = vpack.c.b16 %v601, %v598
    %v842 = vpack.c.b16 %v605, %v602
    %v843 = vpack.c.b16 %v606, %v603
    %v844 = vpack.c.b16 %v607, %v604
    %v845 = vpack.c.b16 %v611, %v608
    %v846 = vpack.c.b16 %v612, %v609
    %v847 = vpack.c.b16 %v613, %v610
    %v848 = vpack.c.b16 %v617, %v614
    %v849 = vpack.c.b16 %v618, %v615
    %v850 = vpack.c.b16 %v619, %v616
    %v851 = vpack.c.b16 %v623, %v620
    %v852 = vpack.c.b16 %v624, %v621
    %v853 = vpack.c.b16 %v625, %v622
    %v854 = vpack.c.b16 %v629, %v626
    %v855 = vpack.c.b16 %v630, %v627
    %v856 = vpack.c.b16 %v631, %v628
    %v857 = vpack.c.b16 %v635, %v632
    %v858 = vpack.c.b16 %v636, %v633
    %v859 = vpack.c.b16 %v637, %v634
    %v860 = vpack.c.b16 %v641, %v638
    %v861 = vpack.c.b16 %v642, %v639
    %v862 = vpack.c.b16 %v643, %v640
    %v863 = vpack.c.b16 %v647, %v644
    %v864 = vpack.c.b16 %v648, %v645
    %v865 = vpack.c.b16 %v649, %v646
    %v866 = vpack.c.b16 %v653, %v650
    %v867 = vpack.c.b16 %v654, %v651
    %v868 = vpack.c.b16 %v655, %v652
    %v869 = vpack.c.b16 %v659, %v656
    %v870 = vpack.c.b16 %v660, %v657
    %v871 = vpack.c.b16 %v661, %v658
    %v872 = vpack.c.b16 %v665, %v662
    %v873 = vpack.c.b16 %v666, %v663
    %v874 = vpack.c.b16 %v667, %v664
    %v875 = vpack.c.b16 %v671, %v668
    %v876 = vpack.c.b16 %v672, %v669
    %v877 = vpack.c.b16 %v673, %v670
    %v878 = vpack.c.b16 %v677, %v674
    %v879 = vpack.c.b16 %v678, %v675
    %v880 = vpack.c.b16 %v679, %v676
    %v881 = vpack.c.b16 %v683, %v680
    %v882 = vpack.c.b16 %v684, %v681
    %v883 = vpack.c.b16 %v685, %v682
    %v884 = vpack.c.b16 %v689, %v686
    %v885 = vpack.c.b16 %v690, %v687
    %v886 = vpack.c.b16 %v691, %v688
    %v887 = vpack.c.b16 %v695, %v692
    %v888 = vpack.c.b16 %v696, %v693
    %v889 = vpack.c.b16 %v697, %v694
    %v890 = vpack.c.b16 %v701, %v698
    %v891 = vpack.c.b16 %v702, %v699
    %v892 = vpack.c.b16 %v703, %v700
    %v893 = vpack.c.b16 %v707, %v704
    %v894 = vpack.c.b16 %v708, %v705
    %v895 = vpack.c.b16 %v709, %v706
    %v896 = vpack.c.b16 %v713, %v710
    %v897 = vpack.c.b16 %v714, %v711
    %v898 = vpack.c.b16 %v715, %v712
    %v899 = vpack.c.b16 %v719, %v716
    %v900 = vpack.c.b16 %v720, %v717
    %v901 = vpack.c.b16 %v721, %v718
    %v902 = vpack.c.b16 %v725, %v722
    %v903 = vpack.c.b16 %v726, %v723
    %v904 = vpack.c.b16 %v727, %v724
    %v905 = vpack.c.b16 %v731, %v728
    %v906 = vpack.c.b16 %v732, %v729
    %v907 = vpack.c.b16 %v733, %v730
    %v908 = vpack.c.b16 %v737, %v734
    %v909 = vpack.c.b16 %v738, %v735
    %v910 = vpack.c.b16 %v739, %v736
    %v911 = vpack.c.b16 %v743, %v740
    %v912 = vpack.c.b16 %v744, %v741
    %v913 = vpack.c.b16 %v745, %v742
    %v914 = vpack.c.b16 %v749, %v746
    %v915 = vpack.c.b16 %v750, %v747
    %v916 = vpack.c.b16 %v751, %v748
    %v917 = vpack.c.b16 %v755, %v752
    %v918 = vpack.c.b16 %v756, %v753
    %v919 = vpack.c.b16 %v757, %v754
    %v920 = vpack.c.b16 %v761, %v758
    %v921 = vpack.c.b16 %v762, %v759
    %v922 = vpack.c.b16 %v763, %v760
    %v923 = vpack.c.b16 %v767, %v764
    %v924 = vpack.c.b16 %v768, %v765
    %v925 = vpack.c.b16 %v769, %v766
    %v926 = vpack.c.b16 %v773, %v770
    %v927 = vpack.c.b16 %v774, %v771
    %v928 = vpack.c.b16 %v775, %v772
    %v929 = vpack.c.b16 %v779, %v776
    %v930 = vpack.c.b16 %v780, %v777
    %v931 = vpack.c.b16 %v781, %v778
    %v932 = vpack.c.b16 %v785, %v782
    %v933 = vpack.c.b16 %v786, %v783
    %v934 = vpack.c.b16 %v787, %v784
    %vm1082 = vcmask 130048
    %v1084 = vsel %vm1082, %v291, 0
    %1086 = vmatprep.subr.bf16.mxu0 %v810
    %1087 = vmatpush1.bf16.msra.mxu0 %v809
    %1088 = vmatprep.subr.bf16.mxu0 %v807
    %1089 = vmatpush1.bf16.msra.mxu0 %v806
    %1090 = vmatprep.subr.bf16.mxu0 %v804
    %1091 = vmatpush1.bf16.msra.mxu0 %v803
    %1092 = vmatprep.subr.bf16.mxu0 %v801
    %1093 = vmatpush1.bf16.msra.mxu0 %v800
    %1094 = vmatprep.subr.bf16.mxu0 %v798
    %1095 = vmatpush1.bf16.msra.mxu0 %v797
    %1096 = vmatprep.subr.bf16.mxu0 %v795
    %1097 = vmatpush1.bf16.msra.mxu0 %v794
    %1098 = vmatprep.subr.bf16.mxu0 %v792
    %1099 = vmatpush1.bf16.msra.mxu0 %v791
    %1100 = vmatprep.subr.bf16.mxu0 %v789
    %1101 = vmatpush1.bf16.msra.mxu0 %v788
    %1102 = vmatprep.subr.bf16.mxu0 %v834
    %1103 = vmatpush2.bf16.msra.mxu0 %v833
    %1104 = vmatprep.subr.bf16.mxu0 %v831
    %1105 = vmatpush2.bf16.msra.mxu0 %v830
    %1106 = vmatprep.subr.bf16.mxu0 %v828
    %1107 = vmatpush2.bf16.msra.mxu0 %v827
    %1108 = vmatprep.subr.bf16.mxu0 %v825
    %1109 = vmatpush2.bf16.msra.mxu0 %v824
    %1110 = vmatprep.subr.bf16.mxu0 %v822
    %1111 = vmatpush2.bf16.msra.mxu0 %v821
    %1112 = vmatprep.subr.bf16.mxu0 %v819
    %1113 = vmatpush2.bf16.msra.mxu0 %v818
    %1114 = vmatprep.subr.bf16.mxu0 %v816
    %1115 = vmatpush2.bf16.msra.mxu0 %v815
    %1116 = vmatprep.subr.bf16.mxu0 %v813
    %1117 = vmatpush2.bf16.msra.mxu0 %v812
    %1118 = vmatprep.mubr.bf16.mxu0 %v286
    %1119 = vmatmul.mubr.bf16.gmra.mxu0 %v285
    %v1120 = vpop.f32.mrf.mxu0
    %v1121 = vadd.f32 %v251, %v1120
    %v1122 = vpop.f32.mrf.mxu0
    %v1123 = vadd.f32 %v255, %v1122
    %v1124 = vpop.f32.mrf.mxu0
    %v1125 = vadd.f32 %v251, %v1124
    %v1126 = vpop.f32.mrf.mxu0
    %v1127 = vadd.f32 %v255, %v1126
    %1128 = vdwg.mxu0
    %1129 = vmatprep.subr.bf16.mxu0 %v858
    %1130 = vmatpush1.bf16.msra.mxu0 %v857
    %1131 = vmatprep.subr.bf16.mxu0 %v855
    %1132 = vmatpush1.bf16.msra.mxu0 %v854
    %1133 = vmatprep.subr.bf16.mxu0 %v852
    %1134 = vmatpush1.bf16.msra.mxu0 %v851
    %1135 = vmatprep.subr.bf16.mxu0 %v849
    %1136 = vmatpush1.bf16.msra.mxu0 %v848
    %1137 = vmatprep.subr.bf16.mxu0 %v846
    %1138 = vmatpush1.bf16.msra.mxu0 %v845
    %1139 = vmatprep.subr.bf16.mxu0 %v843
    %1140 = vmatpush1.bf16.msra.mxu0 %v842
    %1141 = vmatprep.subr.bf16.mxu0 %v840
    %1142 = vmatpush1.bf16.msra.mxu0 %v839
    %1143 = vmatprep.subr.bf16.mxu0 %v837
    %1144 = vmatpush1.bf16.msra.mxu0 %v836
    %1145 = vmatprep.subr.bf16.mxu0 %v882
    %1146 = vmatpush2.bf16.msra.mxu0 %v881
    %1147 = vmatprep.subr.bf16.mxu0 %v879
    %1148 = vmatpush2.bf16.msra.mxu0 %v878
    %1149 = vmatprep.subr.bf16.mxu0 %v876
    %1150 = vmatpush2.bf16.msra.mxu0 %v875
    %1151 = vmatprep.subr.bf16.mxu0 %v873
    %1152 = vmatpush2.bf16.msra.mxu0 %v872
    %1153 = vmatprep.subr.bf16.mxu0 %v870
    %1154 = vmatpush2.bf16.msra.mxu0 %v869
    %1155 = vmatprep.subr.bf16.mxu0 %v867
    %1156 = vmatpush2.bf16.msra.mxu0 %v866
    %1157 = vmatprep.subr.bf16.mxu0 %v864
    %1158 = vmatpush2.bf16.msra.mxu0 %v863
    %1159 = vmatprep.subr.bf16.mxu0 %v861
    %1160 = vmatpush2.bf16.msra.mxu0 %v860
    %1161 = vmatprep.mubr.bf16.mxu0 %v288
    %1162 = vmatmul.mubr.bf16.gmra.mxu0 %v287
    %v1163 = vpop.f32.mrf.mxu0
    %v1164 = vadd.f32 %v1121, %v1163
    %v1165 = vpop.f32.mrf.mxu0
    %v1166 = vadd.f32 %v1123, %v1165
    %v1167 = vpop.f32.mrf.mxu0
    %v1168 = vadd.f32 %v1125, %v1167
    %v1169 = vpop.f32.mrf.mxu0
    %v1170 = vadd.f32 %v1127, %v1169
    %1171 = vdwg.mxu0
    %1172 = vmatprep.subr.bf16.mxu0 %v906
    %1173 = vmatpush1.bf16.msra.mxu0 %v905
    %1174 = vmatprep.subr.bf16.mxu0 %v903
    %1175 = vmatpush1.bf16.msra.mxu0 %v902
    %1176 = vmatprep.subr.bf16.mxu0 %v900
    %1177 = vmatpush1.bf16.msra.mxu0 %v899
    %1178 = vmatprep.subr.bf16.mxu0 %v897
    %1179 = vmatpush1.bf16.msra.mxu0 %v896
    %1180 = vmatprep.subr.bf16.mxu0 %v894
    %1181 = vmatpush1.bf16.msra.mxu0 %v893
    %1182 = vmatprep.subr.bf16.mxu0 %v891
    %1183 = vmatpush1.bf16.msra.mxu0 %v890
    %1184 = vmatprep.subr.bf16.mxu0 %v888
    %1185 = vmatpush1.bf16.msra.mxu0 %v887
    %1186 = vmatprep.subr.bf16.mxu0 %v885
    %1187 = vmatpush1.bf16.msra.mxu0 %v884
    %1188 = vmatprep.subr.bf16.mxu0 %v930
    %1189 = vmatpush2.bf16.msra.mxu0 %v929
    %1190 = vmatprep.subr.bf16.mxu0 %v927
    %1191 = vmatpush2.bf16.msra.mxu0 %v926
    %1192 = vmatprep.subr.bf16.mxu0 %v924
    %1193 = vmatpush2.bf16.msra.mxu0 %v923
    %1194 = vmatprep.subr.bf16.mxu0 %v921
    %1195 = vmatpush2.bf16.msra.mxu0 %v920
    %1196 = vmatprep.subr.bf16.mxu0 %v918
    %1197 = vmatpush2.bf16.msra.mxu0 %v917
    %1198 = vmatprep.subr.bf16.mxu0 %v915
    %1199 = vmatpush2.bf16.msra.mxu0 %v914
    %1200 = vmatprep.subr.bf16.mxu0 %v912
    %1201 = vmatpush2.bf16.msra.mxu0 %v911
    %1202 = vmatprep.subr.bf16.mxu0 %v909
    %1203 = vmatpush2.bf16.msra.mxu0 %v908
    %1204 = vmatprep.mubr.bf16.mxu0 %v290
    %1205 = vmatmul.mubr.bf16.gmra.mxu0 %v289
    %v1206 = vpop.f32.mrf.mxu0
    %v1207 = vadd.f32 %v1164, %v1206
    %v1208 = vpop.f32.mrf.mxu0
    %v1209 = vadd.f32 %v1166, %v1208
    %v1210 = vpop.f32.mrf.mxu0
    %v1211 = vadd.f32 %v1168, %v1210
    %v1212 = vpop.f32.mrf.mxu0
    %v1213 = vadd.f32 %v1170, %v1212
    %1214 = vdwg.mxu0
    %1215 = vmatprep.subr.bf16.mxu0 0
    %1216 = vmatpush1.bf16.msra.mxu0 0
    %1217 = vmatprep.subr.bf16.mxu0 0
    %1218 = vmatpush1.bf16.msra.mxu0 0
    %1219 = vmatprep.subr.bf16.mxu0 0
    %1220 = vmatpush1.bf16.msra.mxu0 0
    %1221 = vmatprep.subr.bf16.mxu0 0
    %1222 = vmatpush1.bf16.msra.mxu0 0
    %1223 = vmatprep.subr.bf16.mxu0 0
    %1224 = vmatpush1.bf16.msra.mxu0 0
    %1225 = vmatprep.subr.bf16.mxu0 0
    %1226 = vmatpush1.bf16.msra.mxu0 0
    %1227 = vmatprep.subr.bf16.mxu0 0
    %1228 = vmatpush1.bf16.msra.mxu0 0
    %1229 = vmatprep.subr.bf16.mxu0 %v933
    %1230 = vmatpush1.bf16.msra.mxu0 %v932
    %1231 = vmatprep.subr.bf16.mxu0 0
    %1232 = vmatpush2.bf16.msra.mxu0 0
    %1233 = vmatprep.subr.bf16.mxu0 0
    %1234 = vmatpush2.bf16.msra.mxu0 0
    %1235 = vmatprep.subr.bf16.mxu0 0
    %1236 = vmatpush2.bf16.msra.mxu0 0
    %1237 = vmatprep.subr.bf16.mxu0 0
    %1238 = vmatpush2.bf16.msra.mxu0 0
    %1239 = vmatprep.subr.bf16.mxu0 0
    %1240 = vmatpush2.bf16.msra.mxu0 0
    %1241 = vmatprep.subr.bf16.mxu0 0
    %1242 = vmatpush2.bf16.msra.mxu0 0
    %1243 = vmatprep.subr.bf16.mxu0 0
    %1244 = vmatpush2.bf16.msra.mxu0 0
    %1245 = vmatprep.subr.bf16.mxu0 0
    %1246 = vmatpush2.bf16.msra.mxu0 0
    %1247 = vmatprep.mubr.bf16.mxu0 0
    %1248 = vmatmul.mubr.bf16.gmra.mxu0 %v1084
    %v1249 = vpop.f32.mrf.mxu0
    %v1250 = vadd.f32 %v1207, %v1249
    %v1251 = vpop.f32.mrf.mxu0
    %v1252 = vadd.f32 %v1209, %v1251
    %v1253 = vpop.f32.mrf.mxu0
    %v1254 = vadd.f32 %v1211, %v1253
    %v1255 = vpop.f32.mrf.mxu0
    %v1256 = vadd.f32 %v1213, %v1255
    %1257 = vdwg.mxu0
    %1258 = vmatprep.subr.bf16.mxu0 0
    %1259 = vmatpush1.bf16.msra.mxu0 %v811
    %1260 = vmatprep.subr.bf16.mxu0 0
    %1261 = vmatpush1.bf16.msra.mxu0 %v808
    %1262 = vmatprep.subr.bf16.mxu0 0
    %1263 = vmatpush1.bf16.msra.mxu0 %v805
    %1264 = vmatprep.subr.bf16.mxu0 0
    %1265 = vmatpush1.bf16.msra.mxu0 %v802
    %1266 = vmatprep.subr.bf16.mxu0 0
    %1267 = vmatpush1.bf16.msra.mxu0 %v799
    %1268 = vmatprep.subr.bf16.mxu0 0
    %1269 = vmatpush1.bf16.msra.mxu0 %v796
    %1270 = vmatprep.subr.bf16.mxu0 0
    %1271 = vmatpush1.bf16.msra.mxu0 %v793
    %1272 = vmatprep.subr.bf16.mxu0 0
    %1273 = vmatpush1.bf16.msra.mxu0 %v790
    %1274 = vmatprep.subr.bf16.mxu0 0
    %1275 = vmatpush2.bf16.msra.mxu0 %v835
    %1276 = vmatprep.subr.bf16.mxu0 0
    %1277 = vmatpush2.bf16.msra.mxu0 %v832
    %1278 = vmatprep.subr.bf16.mxu0 0
    %1279 = vmatpush2.bf16.msra.mxu0 %v829
    %1280 = vmatprep.subr.bf16.mxu0 0
    %1281 = vmatpush2.bf16.msra.mxu0 %v826
    %1282 = vmatprep.subr.bf16.mxu0 0
    %1283 = vmatpush2.bf16.msra.mxu0 %v823
    %1284 = vmatprep.subr.bf16.mxu0 0
    %1285 = vmatpush2.bf16.msra.mxu0 %v820
    %1286 = vmatprep.subr.bf16.mxu0 0
    %1287 = vmatpush2.bf16.msra.mxu0 %v817
    %1288 = vmatprep.subr.bf16.mxu0 0
    %1289 = vmatpush2.bf16.msra.mxu0 %v814
    %1290 = vmatprep.mubr.bf16.mxu0 %v286
    %1291 = vmatmul.mubr.bf16.gmra.mxu0 %v285
    %v1292 = vpop.f32.mrf.mxu0
    %v1293 = vadd.f32 %v259, %v1292
    %v1294 = vpop.f32.mrf.mxu0
    %v1295 = vpop.f32.mrf.mxu0
    %v1296 = vadd.f32 %v259, %v1295
    %v1297 = vpop.f32.mrf.mxu0
    %1298 = vdwg.mxu0
    %1299 = vmatprep.subr.bf16.mxu0 0
    %1300 = vmatpush1.bf16.msra.mxu0 %v859
    %1301 = vmatprep.subr.bf16.mxu0 0
    %1302 = vmatpush1.bf16.msra.mxu0 %v856
    %1303 = vmatprep.subr.bf16.mxu0 0
    %1304 = vmatpush1.bf16.msra.mxu0 %v853
    %1305 = vmatprep.subr.bf16.mxu0 0
    %1306 = vmatpush1.bf16.msra.mxu0 %v850
    %1307 = vmatprep.subr.bf16.mxu0 0
    %1308 = vmatpush1.bf16.msra.mxu0 %v847
    %1309 = vmatprep.subr.bf16.mxu0 0
    %1310 = vmatpush1.bf16.msra.mxu0 %v844
    %1311 = vmatprep.subr.bf16.mxu0 0
    %1312 = vmatpush1.bf16.msra.mxu0 %v841
    %1313 = vmatprep.subr.bf16.mxu0 0
    %1314 = vmatpush1.bf16.msra.mxu0 %v838
    %1315 = vmatprep.subr.bf16.mxu0 0
    %1316 = vmatpush2.bf16.msra.mxu0 %v883
    %1317 = vmatprep.subr.bf16.mxu0 0
    %1318 = vmatpush2.bf16.msra.mxu0 %v880
    %1319 = vmatprep.subr.bf16.mxu0 0
    %1320 = vmatpush2.bf16.msra.mxu0 %v877
    %1321 = vmatprep.subr.bf16.mxu0 0
    %1322 = vmatpush2.bf16.msra.mxu0 %v874
    %1323 = vmatprep.subr.bf16.mxu0 0
    %1324 = vmatpush2.bf16.msra.mxu0 %v871
    %1325 = vmatprep.subr.bf16.mxu0 0
    %1326 = vmatpush2.bf16.msra.mxu0 %v868
    %1327 = vmatprep.subr.bf16.mxu0 0
    %1328 = vmatpush2.bf16.msra.mxu0 %v865
    %1329 = vmatprep.subr.bf16.mxu0 0
    %1330 = vmatpush2.bf16.msra.mxu0 %v862
    %1331 = vmatprep.mubr.bf16.mxu0 %v288
    %1332 = vmatmul.mubr.bf16.gmra.mxu0 %v287
    %v1333 = vpop.f32.mrf.mxu0
    %v1334 = vadd.f32 %v1293, %v1333
    %v1335 = vpop.f32.mrf.mxu0
    %v1336 = vpop.f32.mrf.mxu0
    %v1337 = vadd.f32 %v1296, %v1336
    %v1338 = vpop.f32.mrf.mxu0
    %1339 = vdwg.mxu0
    %1340 = vmatprep.subr.bf16.mxu0 0
    %1341 = vmatpush1.bf16.msra.mxu0 %v907
    %1342 = vmatprep.subr.bf16.mxu0 0
    %1343 = vmatpush1.bf16.msra.mxu0 %v904
    %1344 = vmatprep.subr.bf16.mxu0 0
    %1345 = vmatpush1.bf16.msra.mxu0 %v901
    %1346 = vmatprep.subr.bf16.mxu0 0
    %1347 = vmatpush1.bf16.msra.mxu0 %v898
    %1348 = vmatprep.subr.bf16.mxu0 0
    %1349 = vmatpush1.bf16.msra.mxu0 %v895
    %1350 = vmatprep.subr.bf16.mxu0 0
    %1351 = vmatpush1.bf16.msra.mxu0 %v892
    %1352 = vmatprep.subr.bf16.mxu0 0
    %1353 = vmatpush1.bf16.msra.mxu0 %v889
    %1354 = vmatprep.subr.bf16.mxu0 0
    %1355 = vmatpush1.bf16.msra.mxu0 %v886
    %1356 = vmatprep.subr.bf16.mxu0 0
    %1357 = vmatpush2.bf16.msra.mxu0 %v931
    %1358 = vmatprep.subr.bf16.mxu0 0
    %1359 = vmatpush2.bf16.msra.mxu0 %v928
    %1360 = vmatprep.subr.bf16.mxu0 0
    %1361 = vmatpush2.bf16.msra.mxu0 %v925
    %1362 = vmatprep.subr.bf16.mxu0 0
    %1363 = vmatpush2.bf16.msra.mxu0 %v922
    %1364 = vmatprep.subr.bf16.mxu0 0
    %1365 = vmatpush2.bf16.msra.mxu0 %v919
    %1366 = vmatprep.subr.bf16.mxu0 0
    %1367 = vmatpush2.bf16.msra.mxu0 %v916
    %1368 = vmatprep.subr.bf16.mxu0 0
    %1369 = vmatpush2.bf16.msra.mxu0 %v913
    %1370 = vmatprep.subr.bf16.mxu0 0
    %1371 = vmatpush2.bf16.msra.mxu0 %v910
    %1372 = vmatprep.mubr.bf16.mxu0 %v290
    %1373 = vmatmul.mubr.bf16.gmra.mxu0 %v289
    %v1374 = vpop.f32.mrf.mxu0
    %v1375 = vadd.f32 %v1334, %v1374
    %v1376 = vpop.f32.mrf.mxu0
    %v1377 = vpop.f32.mrf.mxu0
    %v1378 = vadd.f32 %v1337, %v1377
    %v1379 = vpop.f32.mrf.mxu0
    %1380 = vdwg.mxu0
    %1381 = vmatprep.subr.bf16.mxu0 0
    %1382 = vmatpush1.bf16.msra.mxu0 0
    %1383 = vmatprep.subr.bf16.mxu0 0
    %1384 = vmatpush1.bf16.msra.mxu0 0
    %1385 = vmatprep.subr.bf16.mxu0 0
    %1386 = vmatpush1.bf16.msra.mxu0 0
    %1387 = vmatprep.subr.bf16.mxu0 0
    %1388 = vmatpush1.bf16.msra.mxu0 0
    %1389 = vmatprep.subr.bf16.mxu0 0
    %1390 = vmatpush1.bf16.msra.mxu0 0
    %1391 = vmatprep.subr.bf16.mxu0 0
    %1392 = vmatpush1.bf16.msra.mxu0 0
    %1393 = vmatprep.subr.bf16.mxu0 0
    %1394 = vmatpush1.bf16.msra.mxu0 0
    %1395 = vmatprep.subr.bf16.mxu0 0
    %1396 = vmatpush1.bf16.msra.mxu0 %v934
    %1397 = vmatprep.subr.bf16.mxu0 0
    %1398 = vmatpush2.bf16.msra.mxu0 0
    %1399 = vmatprep.subr.bf16.mxu0 0
    %1400 = vmatpush2.bf16.msra.mxu0 0
    %1401 = vmatprep.subr.bf16.mxu0 0
    %1402 = vmatpush2.bf16.msra.mxu0 0
    %1403 = vmatprep.subr.bf16.mxu0 0
    %1404 = vmatpush2.bf16.msra.mxu0 0
    %1405 = vmatprep.subr.bf16.mxu0 0
    %1406 = vmatpush2.bf16.msra.mxu0 0
    %1407 = vmatprep.subr.bf16.mxu0 0
    %1408 = vmatpush2.bf16.msra.mxu0 0
    %1409 = vmatprep.subr.bf16.mxu0 0
    %1410 = vmatpush2.bf16.msra.mxu0 0
    %1411 = vmatprep.subr.bf16.mxu0 0
    %1412 = vmatpush2.bf16.msra.mxu0 0
    %1413 = vmatprep.mubr.bf16.mxu0 0
    %1414 = vmatmul.mubr.bf16.gmra.mxu0 %v1084
    %v1415 = vpop.f32.mrf.mxu0
    %v1416 = vadd.f32 %v1375, %v1415
    %v1417 = vpop.f32.mrf.mxu0
    %v1418 = vpop.f32.mrf.mxu0
    %v1419 = vadd.f32 %v1378, %v1418
    %v1420 = vpop.f32.mrf.mxu0
    %1421 = vdwg.mxu0
    %v1422 = vmax.f32 %v1250, 0.0
    %v1423 = vmax.f32 %v1252, 0.0
    %v1424 = vmax.f32 %v1416, 0.0
    %v1425 = vmax.f32 %v1254, 0.0
    %v1426 = vmax.f32 %v1256, 0.0
    %v1427 = vmax.f32 %v1419, 0.0
    %v1428 = vpack.c.bf16 %v1425, %v1422
    %v1429 = vpack.c.bf16 %v1426, %v1423
    %v1430 = vpack.c.bf16 %v1427, %v1424
    %v1431 = vld [vmem:[%s3] sm:$0xf]
    %v1432 = vld [vmem:[%s3 + $0x4] sm:$0xf]
    %v1433 = vld [vmem:[%s3 + $0x8] sm:$0xf]
    %v1434 = vld [vmem:[%s3 + $0xc] sm:$0xf]
    %v1435 = vld [vmem:[%s3 + $0x10] sm:$0xf]
    %v1436 = vld [vmem:[%s3 + $0x14] sm:$0xf]
    %v1437 = vld [vmem:[%s3 + $0x18] sm:$0xf]
    %v1438 = vld [vmem:[%s3 + $0x1c] sm:$0xf]
    %v1439 = vld [vmem:[%s3 + $0x20] sm:$0xf]
    %v1440 = vld [vmem:[%s3 + $0x24] sm:$0xf]
    %v1441 = vld [vmem:[%s3 + $0x28] sm:$0xf]
    %v1442 = vld [vmem:[%s3 + $0x2c] sm:$0xf]
    %v1443 = vld [vmem:[%s3 + $0x30] sm:$0xf]
    %v1444 = vld [vmem:[%s3 + $0x34] sm:$0xf]
    %v1445 = vld [vmem:[%s3 + $0x38] sm:$0xf]
    %v1446 = vld [vmem:[%s3 + $0x3c] sm:$0xf]
    %v1447 = vld [vmem:[%s3 + $0x40] sm:$0xf]
    %v1448 = vld [vmem:[%s3 + $0x44] sm:$0xf]
    %v1449 = vld [vmem:[%s3 + $0x48] sm:$0xf]
    %v1450 = vld [vmem:[%s3 + $0x4c] sm:$0xf]
    %v1451 = vld [vmem:[%s3 + $0x50] sm:$0xf]
    %v1452 = vld [vmem:[%s3 + $0x54] sm:$0xf]
    %v1453 = vld [vmem:[%s3 + $0x58] sm:$0xf]
    %v1454 = vld [vmem:[%s3 + $0x5c] sm:$0xf]
    %v1455 = vld [vmem:[%s3 + $0x60] sm:$0xf]
    %v1456 = vld [vmem:[%s3 + $0x64] sm:$0xf]
    %v1457 = vld [vmem:[%s3 + $0x68] sm:$0xf]
    %v1458 = vld [vmem:[%s3 + $0x6c] sm:$0xf]
    %v1459 = vld [vmem:[%s3 + $0x70] sm:$0xf]
    %v1460 = vld [vmem:[%s3 + $0x74] sm:$0xf]
    %v1461 = vld [vmem:[%s3 + $0x78] sm:$0xf]
    %v1462 = vld [vmem:[%s3 + $0x7c] sm:$0xf]
    %v1463 = vld [vmem:[%s3 + $0x80] sm:$0xf]
    %v1464 = vld [vmem:[%s3 + $0x84] sm:$0xf]
    %v1465 = vld [vmem:[%s3 + $0x88] sm:$0xf]
    %v1466 = vld [vmem:[%s3 + $0x8c] sm:$0xf]
    %v1467 = vld [vmem:[%s3 + $0x90] sm:$0xf]
    %v1468 = vld [vmem:[%s3 + $0x94] sm:$0xf]
    %v1469 = vld [vmem:[%s3 + $0x98] sm:$0xf]
    %v1470 = vld [vmem:[%s3 + $0x9c] sm:$0xf]
    %v1471 = vld [vmem:[%s3 + $0xa0] sm:$0xf]
    %v1472 = vld [vmem:[%s3 + $0xa4] sm:$0xf]
    %v1473 = vld [vmem:[%s3 + $0xa8] sm:$0xf]
    %v1474 = vld [vmem:[%s3 + $0xac] sm:$0xf]
    %v1475 = vld [vmem:[%s3 + $0xb0] sm:$0xf]
    %v1476 = vld [vmem:[%s3 + $0xb4] sm:$0xf]
    %v1477 = vld [vmem:[%s3 + $0xb8] sm:$0xf]
    %v1478 = vld [vmem:[%s3 + $0xbc] sm:$0xf]
    %v1479 = vld [vmem:[%s4] sm:$0x1]
    %v1481 = vlaneseq
    %v1482 = vshrl.u32 %v1481, 7
    %v1483 = vsub.s32 0, %v1482
    %v1484 = vrot.slane %v1479, %v1483
    %v1534 = vunpack.c.l.b16 %v1431
    %v1535 = vunpack.c.l.b16 %v1432
    %v1536 = vunpack.c.l.b16 %v1433
    %v1537 = vunpack.c.l.b16 %v1434
    %v1538 = vunpack.c.l.b16 %v1435
    %v1539 = vunpack.c.l.b16 %v1436
    %v1540 = vunpack.c.l.b16 %v1437
    %v1541 = vunpack.c.l.b16 %v1438
    %v1542 = vunpack.c.l.b16 %v1439
    %v1543 = vunpack.c.l.b16 %v1440
    %v1544 = vunpack.c.l.b16 %v1441
    %v1545 = vunpack.c.l.b16 %v1442
    %v1546 = vunpack.c.l.b16 %v1443
    %v1547 = vunpack.c.l.b16 %v1444
    %v1548 = vunpack.c.l.b16 %v1445
    %v1549 = vunpack.c.l.b16 %v1446
    %v1550 = vunpack.c.l.b16 %v1447
    %v1551 = vunpack.c.l.b16 %v1448
    %v1552 = vunpack.c.l.b16 %v1449
    %v1553 = vunpack.c.l.b16 %v1450
    %v1554 = vunpack.c.l.b16 %v1451
    %v1555 = vunpack.c.l.b16 %v1452
    %v1556 = vunpack.c.l.b16 %v1453
    %v1557 = vunpack.c.l.b16 %v1454
    %v1558 = vunpack.c.l.b16 %v1455
    %v1559 = vunpack.c.l.b16 %v1456
    %v1560 = vunpack.c.l.b16 %v1457
    %v1561 = vunpack.c.l.b16 %v1458
    %v1562 = vunpack.c.l.b16 %v1459
    %v1563 = vunpack.c.l.b16 %v1460
    %v1564 = vunpack.c.l.b16 %v1461
    %v1565 = vunpack.c.l.b16 %v1462
    %v1566 = vunpack.c.l.b16 %v1463
    %v1567 = vunpack.c.l.b16 %v1464
    %v1568 = vunpack.c.l.b16 %v1465
    %v1569 = vunpack.c.l.b16 %v1466
    %v1570 = vunpack.c.l.b16 %v1467
    %v1571 = vunpack.c.l.b16 %v1468
    %v1572 = vunpack.c.l.b16 %v1469
    %v1573 = vunpack.c.l.b16 %v1470
    %v1574 = vunpack.c.l.b16 %v1471
    %v1575 = vunpack.c.l.b16 %v1472
    %v1576 = vunpack.c.l.b16 %v1473
    %v1577 = vunpack.c.l.b16 %v1474
    %v1578 = vunpack.c.l.b16 %v1475
    %v1579 = vunpack.c.l.b16 %v1476
    %v1580 = vunpack.c.l.b16 %v1477
    %v1581 = vunpack.c.l.b16 %v1478
    %v1582 = vpack.c.b16 %v1535, %v1534
    %v1583 = vpack.c.b16 %v1537, %v1536
    %v1584 = vpack.c.b16 %v1539, %v1538
    %v1585 = vpack.c.b16 %v1541, %v1540
    %v1586 = vpack.c.b16 %v1543, %v1542
    %v1587 = vpack.c.b16 %v1545, %v1544
    %v1588 = vpack.c.b16 %v1547, %v1546
    %v1589 = vpack.c.b16 %v1549, %v1548
    %v1590 = vpack.c.b16 %v1551, %v1550
    %v1591 = vpack.c.b16 %v1553, %v1552
    %v1592 = vpack.c.b16 %v1555, %v1554
    %v1593 = vpack.c.b16 %v1557, %v1556
    %v1594 = vpack.c.b16 %v1559, %v1558
    %v1595 = vpack.c.b16 %v1561, %v1560
    %v1596 = vpack.c.b16 %v1563, %v1562
    %v1597 = vpack.c.b16 %v1565, %v1564
    %v1598 = vpack.c.b16 %v1567, %v1566
    %v1599 = vpack.c.b16 %v1569, %v1568
    %v1600 = vpack.c.b16 %v1571, %v1570
    %v1601 = vpack.c.b16 %v1573, %v1572
    %v1602 = vpack.c.b16 %v1575, %v1574
    %v1603 = vpack.c.b16 %v1577, %v1576
    %v1604 = vpack.c.b16 %v1579, %v1578
    %v1605 = vpack.c.b16 %v1581, %v1580
    %1630 = vmatprep.subr.bf16.mxu0 0
    %1631 = vmatpush1.bf16.msra.mxu0 %v1589
    %1632 = vmatprep.subr.bf16.mxu0 0
    %1633 = vmatpush1.bf16.msra.mxu0 %v1588
    %1634 = vmatprep.subr.bf16.mxu0 0
    %1635 = vmatpush1.bf16.msra.mxu0 %v1587
    %1636 = vmatprep.subr.bf16.mxu0 0
    %1637 = vmatpush1.bf16.msra.mxu0 %v1586
    %1638 = vmatprep.subr.bf16.mxu0 0
    %1639 = vmatpush1.bf16.msra.mxu0 %v1585
    %1640 = vmatprep.subr.bf16.mxu0 0
    %1641 = vmatpush1.bf16.msra.mxu0 %v1584
    %1642 = vmatprep.subr.bf16.mxu0 0
    %1643 = vmatpush1.bf16.msra.mxu0 %v1583
    %1644 = vmatprep.subr.bf16.mxu0 0
    %1645 = vmatpush1.bf16.msra.mxu0 %v1582
    %1646 = vmatprep.subr.bf16.mxu0 0
    %1647 = vmatpush2.bf16.msra.mxu0 %v1597
    %1648 = vmatprep.subr.bf16.mxu0 0
    %1649 = vmatpush2.bf16.msra.mxu0 %v1596
    %1650 = vmatprep.subr.bf16.mxu0 0
    %1651 = vmatpush2.bf16.msra.mxu0 %v1595
    %1652 = vmatprep.subr.bf16.mxu0 0
    %1653 = vmatpush2.bf16.msra.mxu0 %v1594
    %1654 = vmatprep.subr.bf16.mxu0 0
    %1655 = vmatpush2.bf16.msra.mxu0 %v1593
    %1656 = vmatprep.subr.bf16.mxu0 0
    %1657 = vmatpush2.bf16.msra.mxu0 %v1592
    %1658 = vmatprep.subr.bf16.mxu0 0
    %1659 = vmatpush2.bf16.msra.mxu0 %v1591
    %1660 = vmatprep.subr.bf16.mxu0 0
    %1661 = vmatpush2.bf16.msra.mxu0 %v1590
    %1662 = vmatprep.mubr.bf16.mxu0 %v1429
    %1663 = vmatmul.mubr.bf16.gmra.mxu0 %v1428
    %v1664 = vpop.f32.mrf.mxu0
    %v1665 = vadd.f32 %v1484, %v1664
    %v1666 = vpop.f32.mrf.mxu0
    %v1667 = vpop.f32.mrf.mxu0
    %v1668 = vadd.f32 %v1484, %v1667
    %v1669 = vpop.f32.mrf.mxu0
    %1670 = vdwg.mxu0
    %1671 = vmatprep.subr.bf16.mxu0 0
    %1672 = vmatpush1.bf16.msra.mxu0 %v1605
    %1673 = vmatprep.subr.bf16.mxu0 0
    %1674 = vmatpush1.bf16.msra.mxu0 %v1604
    %1675 = vmatprep.subr.bf16.mxu0 0
    %1676 = vmatpush1.bf16.msra.mxu0 %v1603
    %1677 = vmatprep.subr.bf16.mxu0 0
    %1678 = vmatpush1.bf16.msra.mxu0 %v1602
    %1679 = vmatprep.subr.bf16.mxu0 0
    %1680 = vmatpush1.bf16.msra.mxu0 %v1601
    %1681 = vmatprep.subr.bf16.mxu0 0
    %1682 = vmatpush1.bf16.msra.mxu0 %v1600
    %1683 = vmatprep.subr.bf16.mxu0 0
    %1684 = vmatpush1.bf16.msra.mxu0 %v1599
    %1685 = vmatprep.subr.bf16.mxu0 0
    %1686 = vmatpush1.bf16.msra.mxu0 %v1598
    %1687 = vmatprep.subr.bf16.mxu0 0
    %1688 = vmatpush2.bf16.msra.mxu0 0
    %1689 = vmatprep.subr.bf16.mxu0 0
    %1690 = vmatpush2.bf16.msra.mxu0 0
    %1691 = vmatprep.subr.bf16.mxu0 0
    %1692 = vmatpush2.bf16.msra.mxu0 0
    %1693 = vmatprep.subr.bf16.mxu0 0
    %1694 = vmatpush2.bf16.msra.mxu0 0
    %1695 = vmatprep.subr.bf16.mxu0 0
    %1696 = vmatpush2.bf16.msra.mxu0 0
    %1697 = vmatprep.subr.bf16.mxu0 0
    %1698 = vmatpush2.bf16.msra.mxu0 0
    %1699 = vmatprep.subr.bf16.mxu0 0
    %1700 = vmatpush2.bf16.msra.mxu0 0
    %1701 = vmatprep.subr.bf16.mxu0 0
    %1702 = vmatpush2.bf16.msra.mxu0 0
    %1703 = vmatprep.mubr.bf16.mxu0 0
    %1704 = vmatmul.mubr.bf16.gmra.mxu0 %v1430
    %v1705 = vpop.f32.mrf.mxu0
    %v1706 = vadd.f32 %v1665, %v1705
    %v1707 = vpop.f32.mrf.mxu0
    %v1708 = vpop.f32.mrf.mxu0
    %v1709 = vadd.f32 %v1668, %v1708
    %v1710 = vpop.f32.mrf.mxu0
    %1711 = vdwg.mxu0
    %v1712 = vmax.f32 %v1706, 0.0
    %v1713 = vmax.f32 %v1709, 0.0
    %v1714 = vpack.c.bf16 %v1713, %v1712
    %v1715 = vld [vmem:[%s5] sm:$0xf]
    %v1716 = vld [vmem:[%s5 + $0x4] sm:$0xf]
    %v1717 = vld [vmem:[%s5 + $0x8] sm:$0xf]
    %v1718 = vld [vmem:[%s5 + $0xc] sm:$0xf]
    %v1719 = vld [vmem:[%s5 + $0x10] sm:$0xf]
    %v1720 = vld [vmem:[%s5 + $0x14] sm:$0xf]
    %v1721 = vld [vmem:[%s5 + $0x18] sm:$0xf]
    %v1722 = vld [vmem:[%s5 + $0x1c] sm:$0xf]
    %v1723 = vld [vmem:[%s5 + $0x20] sm:$0xf]
    %v1724 = vld [vmem:[%s5 + $0x24] sm:$0xf]
    %v1725 = vld [vmem:[%s5 + $0x28] sm:$0xf]
    %v1726 = vld [vmem:[%s5 + $0x2c] sm:$0xf]
    %v1727 = vld [vmem:[%s5 + $0x30] sm:$0xf]
    %v1728 = vld [vmem:[%s5 + $0x34] sm:$0xf]
    %v1729 = vld [vmem:[%s5 + $0x38] sm:$0xf]
    %v1730 = vld [vmem:[%s5 + $0x3c] sm:$0xf]
    %v1731 = vld [vmem:[%s6] sm:$0x1]
    %v1733 = vlaneseq
    %v1734 = vshrl.u32 %v1733, 7
    %v1735 = vsub.s32 0, %v1734
    %v1736 = vrot.slane %v1731, %v1735
    %v1754 = vunpack.c.l.b16 %v1715
    %v1755 = vunpack.c.l.b16 %v1716
    %v1756 = vunpack.c.l.b16 %v1717
    %v1757 = vunpack.c.l.b16 %v1718
    %v1758 = vunpack.c.l.b16 %v1719
    %v1759 = vunpack.c.l.b16 %v1720
    %v1760 = vunpack.c.l.b16 %v1721
    %v1761 = vunpack.c.l.b16 %v1722
    %v1762 = vunpack.c.l.b16 %v1723
    %v1763 = vunpack.c.l.b16 %v1724
    %v1764 = vunpack.c.l.b16 %v1725
    %v1765 = vunpack.c.l.b16 %v1726
    %v1766 = vunpack.c.l.b16 %v1727
    %v1767 = vunpack.c.l.b16 %v1728
    %v1768 = vunpack.c.l.b16 %v1729
    %v1769 = vunpack.c.l.b16 %v1730
    %v1770 = vpack.c.b16 %v1755, %v1754
    %v1771 = vpack.c.b16 %v1757, %v1756
    %v1772 = vpack.c.b16 %v1759, %v1758
    %v1773 = vpack.c.b16 %v1761, %v1760
    %v1774 = vpack.c.b16 %v1763, %v1762
    %v1775 = vpack.c.b16 %v1765, %v1764
    %v1776 = vpack.c.b16 %v1767, %v1766
    %v1777 = vpack.c.b16 %v1769, %v1768
    %1786 = vmatprep.subr.bf16.mxu0 0
    %1787 = vmatpush1.bf16.msra.mxu0 %v1777
    %1788 = vmatprep.subr.bf16.mxu0 0
    %1789 = vmatpush1.bf16.msra.mxu0 %v1776
    %1790 = vmatprep.subr.bf16.mxu0 0
    %1791 = vmatpush1.bf16.msra.mxu0 %v1775
    %1792 = vmatprep.subr.bf16.mxu0 0
    %1793 = vmatpush1.bf16.msra.mxu0 %v1774
    %1794 = vmatprep.subr.bf16.mxu0 0
    %1795 = vmatpush1.bf16.msra.mxu0 %v1773
    %1796 = vmatprep.subr.bf16.mxu0 0
    %1797 = vmatpush1.bf16.msra.mxu0 %v1772
    %1798 = vmatprep.subr.bf16.mxu0 0
    %1799 = vmatpush1.bf16.msra.mxu0 %v1771
    %1800 = vmatprep.subr.bf16.mxu0 0
    %1801 = vmatpush1.bf16.msra.mxu0 %v1770
    %1802 = vmatprep.subr.bf16.mxu0 0
    %1803 = vmatpush2.bf16.msra.mxu0 0
    %1804 = vmatprep.subr.bf16.mxu0 0
    %1805 = vmatpush2.bf16.msra.mxu0 0
    %1806 = vmatprep.subr.bf16.mxu0 0
    %1807 = vmatpush2.bf16.msra.mxu0 0
    %1808 = vmatprep.subr.bf16.mxu0 0
    %1809 = vmatpush2.bf16.msra.mxu0 0
    %1810 = vmatprep.subr.bf16.mxu0 0
    %1811 = vmatpush2.bf16.msra.mxu0 0
    %1812 = vmatprep.subr.bf16.mxu0 0
    %1813 = vmatpush2.bf16.msra.mxu0 0
    %1814 = vmatprep.subr.bf16.mxu0 0
    %1815 = vmatpush2.bf16.msra.mxu0 0
    %1816 = vmatprep.subr.bf16.mxu0 0
    %1817 = vmatpush2.bf16.msra.mxu0 0
    %1818 = vmatprep.mubr.bf16.mxu0 0
    %1819 = vmatmul.mubr.bf16.gmra.mxu0 %v1714
    %v1820 = vpop.f32.mrf.mxu0
    %v1821 = vadd.f32 %v1736, %v1820
    %v1822 = vpop.f32.mrf.mxu0
    %v1823 = vpop.f32.mrf.mxu0
    %v1824 = vadd.f32 %v1736, %v1823
    %v1825 = vpop.f32.mrf.mxu0
    %1826 = vdwg.mxu0
    %v1827 = vmax.f32 %v1821, 0.0
    %v1828 = vmax.f32 %v1824, 0.0
    %1829 = vst [vmem:[#allocation5] sm:$0xff] %v1827
    %1830 = vst [vmem:[#allocation5 + $0x8] sm:$0xff] %v1828
    // Predicated region
    $region34: #{linear_mnist_forward.1} parent=1 // pred_check
      _
    $region35: #{linear_mnist_forward.1} parent=1 // pred_check_branch
      %1832 = sbr.rel (0) target = $region37
    $region36: #{linear_mnist_forward.1} parent=1 // pred_region
      %s1834 = ssub.s32 256, 256
      %1835 = vsyncadd [#allocation4], %s1834
      %s1836 = sshll.u32 [#allocation5], 4
      %s1837 = int_to_ptr.vmem [resolvable:$true] %s1836
      %1842 = dma.vmem_to_hbm [thread:$0]  %s1837, 256, %s7, [#allocation4], 128, 128, 8
    $region37: #{linear_mnist_forward.1} parent=1 // pred_fallthru
      _
    // Predicated region
    $region38: #{linear_mnist_forward.1} parent=1 // pred_check
      _
    $region39: #{linear_mnist_forward.1} parent=1 // pred_check_branch
      %1844 = sbr.rel (0) target = $region41
    $region40: #{linear_mnist_forward.1} parent=1 // pred_region
      %1845 = dma.done [#allocation4], 256
    $region41: #{linear_mnist_forward.1} parent=1 // pred_fallthru
      _
    %1846 = vsyncpa [#allocation3], 1
    %1847 = vsyncpa [#allocation4], 1

</llo_original>
